<compile_context>
chip_gen: v5e
topology: v5e:2x2
jax: 0.10.0
libtpu: 0.0.40
codegen_flags: <defaults>
</compile_context>

<pallas_src>
import jax
import jax.numpy as jnp
from jax import lax
from jax.experimental import pallas as pl
from jax.experimental.pallas import tpu as pltpu


# ---------------------------------------------------------------------------
# helpers
# ---------------------------------------------------------------------------
def _round_up(x, m):
    return ((x + m - 1) // m) * m


def _pad_to(a, shape):
    pads = [(0, s - d) for d, s in zip(a.shape, shape)]
    return jnp.pad(a, pads)


def _device_kind():
    try:
        return jax.devices()[0].device_kind.lower()
    except Exception:
        return ""


def _num_tensorcores():
    # v7x has 2 TensorCores per chip; v5e/v6e have 1.
    kind = _device_kind()
    return 2 if ("v7" in kind or "tpu7" in kind) else 1


def _vmem_ceiling_bytes():
    kind = _device_kind()
    if "v7" in kind or "tpu7" in kind:
        return 56 * 1024 * 1024      # 64 MiB physical -> leave compiler headroom
    if "v5" in kind or "v6" in kind or "lite" in kind:
        return 100 * 1024 * 1024     # 128 MiB physical
    return 56 * 1024 * 1024          # unknown generation: be conservative


def _clamp_vmem(nbytes):
    return int(min(_vmem_ceiling_bytes(), max(32 * 1024 * 1024, nbytes)))


# ---------------------------------------------------------------------------
# Kernel 1: multi-layer tanh RNN recurrence (time-major)
# ---------------------------------------------------------------------------
def make_rnn_kernel(num_layers, T, TB, E_pad, H_pad, unroll):
    """Kernel closure for fixed (static) layer count / padded shapes / batch shard TB."""

    def kernel(*refs):
        idx = 0
        emb_ref = refs[idx]; idx += 1                              # (T, TB, E_pad)   bf16
        h0_ref = refs[idx]; idx += 1                               # (L, TB, H_pad)   f32
        wih_refs = refs[idx:idx + num_layers]; idx += num_layers   # (in_pad, H_pad)  bf16
        whh_refs = refs[idx:idx + num_layers]; idx += num_layers   # (H_pad, H_pad)   bf16
        b_refs = refs[idx:idx + num_layers]; idx += num_layers     # (1, H_pad)       f32
        seq_ref = refs[idx]; idx += 1                              # (T, TB, H_pad)   bf16 out
        hid_ref = refs[idx]; idx += 1                              # (L, TB, H_pad)   f32  out
        pre_ref = refs[idx]                                        # (T*TB, H_pad)    f32 scratch

        for l in range(num_layers):
            wih = wih_refs[l][...]            # (in_pad, H_pad) bf16
            whh = whh_refs[l][...]            # (H_pad, H_pad)  bf16
            b = b_refs[l][...]                # (1, H_pad)      f32 (= b_ih + b_hh)

            if l == 0:
                x_flat = emb_ref[...].reshape(T * TB, E_pad)       # bf16, aligned reshape
            else:
                # previous layer's outputs live in seq_ref (bf16) -> no aliasing with pre_ref
                x_flat = seq_ref[...].reshape(T * TB, H_pad)

            # Hoisted input projection for ALL timesteps: one big MXU matmul (bias folded in).
            pre_ref[...] = (
                jnp.dot(x_flat, wih, preferred_element_type=jnp.float32) + b
            )

            h_init = h0_ref[l]                # (TB, H_pad) f32

            def step(t, h, whh=whh):
                row = pl.multiple_of(t * TB, TB)
                pre_t = pre_ref[pl.ds(row, TB), :]                 # f32 (TB, H_pad)
                h_new = jnp.tanh(
                    pre_t
                    + jnp.dot(h.astype(jnp.bfloat16), whh,
                              preferred_element_type=jnp.float32)
                )
                # Write this layer's output for timestep t directly (bf16, half-width store).
                seq_ref[t] = h_new.astype(jnp.bfloat16)
                return h_new

            h_final = lax.fori_loop(0, T, step, h_init, unroll=unroll)
            hid_ref[l] = h_final

    return kernel


# ---------------------------------------------------------------------------
# Kernel 2: full-K tiled final FC  (M, H) @ (H, V) + b  -> bf16 logits
# ---------------------------------------------------------------------------
def fc_kernel(x_ref, w_ref, b_ref, o_ref):
    acc = jnp.dot(x_ref[...], w_ref[...], preferred_element_type=jnp.float32)
    o_ref[...] = (acc + b_ref[...]).astype(o_ref.dtype)


# ---------------------------------------------------------------------------
# Wrapper (PyTorch-equivalent forward)
# ---------------------------------------------------------------------------
def rnn_model_forward(x, hidden, params):
    """x: (B, T) int32, hidden: (L, B, H) f32 -> (output (B, T, V) f32, hidden_out (L, B, H))."""
    emb_table = params["embedding"]          # (V, E)
    B, T = x.shape
    L, _, H = hidden.shape
    V, E = emb_table.shape

    # Lane/sublane-dense padded shapes (B padded to 16 for bf16 sublane packing).
    B_pad = _round_up(B, 16)
    E_pad = _round_up(E, 128)
    H_pad = _round_up(H, 128)

    # --- glue: time-major bf16 embedding gather + padding ---
    emb = jnp.take(emb_table.astype(jnp.bfloat16), x.T, axis=0)    # (T, B, E) bf16
    emb = _pad_to(emb, (T, B_pad, E_pad))

    h0 = _pad_to(hidden.astype(jnp.float32), (L, B_pad, H_pad))

    wih_p, whh_p, b_p = [], [], []
    for l in range(L):
        in_pad = E_pad if l == 0 else H_pad
        wih_t = params["w_ih"][l].T                                # (in_dim, H)
        wih_p.append(_pad_to(wih_t, (in_pad, H_pad)).astype(jnp.bfloat16))
        whh_p.append(_pad_to(params["w_hh"][l].T, (H_pad, H_pad)).astype(jnp.bfloat16))
        b = (params["b_ih"][l] + params["b_hh"][l]).reshape(1, H)
        b_p.append(_pad_to(b, (1, H_pad)).astype(jnp.float32))

    # --- recurrence grid: shard the batch only when a second TensorCore exists (v7x) ---
    n_shards = 2 if (_num_tensorcores() == 2 and B_pad % 32 == 0) else 1
    TB = B_pad // n_shards

    unroll = T if T <= 8 else 4
    rnn_kernel = make_rnn_kernel(L, T, TB, E_pad, H_pad, unroll)

    in_specs = [
        pl.BlockSpec((T, TB, E_pad), lambda b: (0, b, 0)),
        pl.BlockSpec((L, TB, H_pad), lambda b: (0, b, 0)),
    ]
    for l in range(L):
        in_pad = E_pad if l == 0 else H_pad
        in_specs.append(pl.BlockSpec((in_pad, H_pad), lambda b: (0, 0)))
    for _ in range(L):
        in_specs.append(pl.BlockSpec((H_pad, H_pad), lambda b: (0, 0)))
    for _ in range(L):
        in_specs.append(pl.BlockSpec((1, H_pad), lambda b: (0, 0)))

    out_specs = (
        pl.BlockSpec((T, TB, H_pad), lambda b: (0, b, 0)),
        pl.BlockSpec((L, TB, H_pad), lambda b: (0, b, 0)),
    )

    w_bytes = (sum(int(w.size) * 2 for w in wih_p)
               + sum(int(w.size) * 2 for w in whh_p)
               + sum(int(b.size) * 4 for b in b_p))
    rnn_foot = (2 * (T * TB * E_pad * 2 + L * TB * H_pad * 4)      # double-buffered inputs
                + 2 * w_bytes                                      # weights (constant index map)
                + 2 * (T * TB * H_pad * 2 + L * TB * H_pad * 4)    # double-buffered outputs
                + T * TB * H_pad * 4)                              # f32 pre-activation scratch
    rnn_vmem = _clamp_vmem(2 * rnn_foot)

    seq_out, hidden_out_pad = pl.pallas_call(
        rnn_kernel,
        out_shape=(
            jax.ShapeDtypeStruct((T, B_pad, H_pad), jnp.bfloat16),
            jax.ShapeDtypeStruct((L, B_pad, H_pad), jnp.float32),
        ),
        grid_spec=pltpu.PrefetchScalarGridSpec(
            num_scalar_prefetch=0,
            grid=(n_shards,),
            in_specs=in_specs,
            out_specs=out_specs,
            scratch_shapes=[pltpu.VMEM((T * TB, H_pad), jnp.float32)],
        ),
        compiler_params=pltpu.CompilerParams(
            dimension_semantics=("parallel",),
            vmem_limit_bytes=rnn_vmem),
    )(emb, h0, *wih_p, *whh_p, *b_p)

    # --- batch-major transpose BEFORE the FC (bf16, H-wide: much cheaper than (T,B,V) f32) ---
    feats = jnp.transpose(seq_out, (1, 0, 2)).reshape(B_pad * T, H_pad)   # (M, H_pad) bf16
    M = B_pad * T

    # FC tile selection: large tm (pad M up to the tile, never fall back to tiny tiles),
    # lane-dense tn, full-K (tk = H_pad -> no K grid axis / no accumulator).
    if M >= 2048:
        tm = 1024
    elif M >= 512:
        tm = 512
    else:
        tm = _round_up(M, 256)
    M_pad = _round_up(M, tm)

    if V > 512:
        V_pad = _round_up(V, 512)
        tn = 512
    else:
        V_pad = _round_up(V, 128)
        tn = V_pad

    feats = _pad_to(feats, (M_pad, H_pad))
    fcw_p = _pad_to(params["fc_w"].T, (H_pad, V_pad)).astype(jnp.bfloat16)
    fcb_p = _pad_to(params["fc_b"].reshape(1, V), (1, V_pad)).astype(jnp.float32)

    fc_foot = 2 * (tm * H_pad * 2 + H_pad * tn * 2 + tn * 4 + tm * tn * 2)
    fc_vmem = _clamp_vmem(2 * fc_foot)

    logits_flat = pl.pallas_call(
        fc_kernel,
        out_shape=jax.ShapeDtypeStruct((M_pad, V_pad), jnp.bfloat16),
        grid_spec=pltpu.PrefetchScalarGridSpec(
            num_scalar_prefetch=0,
            grid=(M_pad // tm, V_pad // tn),
            in_specs=[
                pl.BlockSpec((tm, H_pad), lambda i, j: (i, 0)),
                pl.BlockSpec((H_pad, tn), lambda i, j: (0, j)),
                pl.BlockSpec((1, tn), lambda i, j: (0, j)),
            ],
            out_specs=pl.BlockSpec((tm, tn), lambda i, j: (i, j)),
        ),
        compiler_params=pltpu.CompilerParams(
            dimension_semantics=("parallel", "parallel"),
            vmem_limit_bytes=fc_vmem),
    )(feats, fcw_p, fcb_p)

    # --- glue: unpad; already batch-first, no post-FC transpose ---
    logits = logits_flat[:M].reshape(B_pad, T, V_pad)[:B, :, :V]   # (B, T, V) bf16
    # Cast back to f32 only to match nn.Linear's f32 output dtype; drop this cast if the
    # consumer (e.g. cross-entropy) accepts bf16 logits directly.
    output = logits.astype(jnp.float32)
    hidden_out = hidden_out_pad[:, :B, :H]                         # (L, B, H) f32
    return output, hidden_out


# ---------------------------------------------------------------------------
# params + pure-JAX reference (PyTorch nn.RNN tanh, eval mode)
# ---------------------------------------------------------------------------
def init_params(key, vocab_size, embed_size, hidden_size, num_layers):
    keys = jax.random.split(key, 4 + 4 * num_layers)
    k = iter(keys)
    params = {
        "embedding": jax.random.normal(next(k), (vocab_size, embed_size), jnp.float32) * 0.1,
        "w_ih": [], "w_hh": [], "b_ih": [], "b_hh": [],
    }
    for l in range(num_layers):
        in_dim = embed_size if l == 0 else hidden_size
        params["w_ih"].append(jax.random.normal(next(k), (hidden_size, in_dim), jnp.float32) * 0.1)
        params["w_hh"].append(jax.random.normal(next(k), (hidden_size, hidden_size), jnp.float32) * 0.1)
        params["b_ih"].append(jax.random.normal(next(k), (hidden_size,), jnp.float32) * 0.1)
        params["b_hh"].append(jax.random.normal(next(k), (hidden_size,), jnp.float32) * 0.1)
    params["fc_w"] = jax.random.normal(next(k), (vocab_size, hidden_size), jnp.float32) * 0.1
    params["fc_b"] = jax.random.normal(next(k), (vocab_size,), jnp.float32) * 0.1
    return params


def reference_forward(x, hidden, params):
    emb = jnp.take(params["embedding"], x, axis=0)             # (B, T, E)
    B, T, _ = emb.shape
    L = hidden.shape[0]
    layer_in = emb
    h_finals = []
    for l in range(L):
        w_ih, w_hh = params["w_ih"][l], params["w_hh"][l]
        b_ih, b_hh = params["b_ih"][l], params["b_hh"][l]
        h = hidden[l]
        outs = []
        for t in range(T):
            h = jnp.tanh(layer_in[:, t, :] @ w_ih.T + b_ih + h @ w_hh.T + b_hh)
            outs.append(h)
        layer_in = jnp.stack(outs, axis=1)
        h_finals.append(h)
    out = layer_in @ params["fc_w"].T + params["fc_b"]
    return out, jnp.stack(h_finals, axis=0)


if __name__ == "__main__":
    vocab_size, embed_size, hidden_size, num_layers = 64, 32, 32, 2
    batch, seq = 2, 8

    key = jax.random.PRNGKey(0)
    kp, kx = jax.random.split(key)
    params = init_params(kp, vocab_size, embed_size, hidden_size, num_layers)

    x = jax.random.randint(kx, (batch, seq), 0, vocab_size, dtype=jnp.int32)
    hidden = jnp.zeros((num_layers, batch, hidden_size), jnp.float32)  # init_hidden

    out, h_out = rnn_model_forward(x, hidden, params)
    out = jax.block_until_ready(out)
    h_out = jax.block_until_ready(h_out)

    ref_out, ref_h = reference_forward(x, hidden, params)
    assert out.shape == (batch, seq, vocab_size)
    assert h_out.shape == (num_layers, batch, hidden_size)
    # bf16 MXU inputs / bf16 logits with f32 accumulation -> loosened tolerance vs f32 reference.
    assert jnp.allclose(out, ref_out, atol=2e-2), "logits mismatch vs reference"
    assert jnp.allclose(h_out, ref_h, atol=2e-2), "hidden mismatch vs reference"

    print("KERNEL_OK")
</pallas_src>

<mosaic_0001>
module attributes {stable_mosaic.version = 11 : i64} {
  func.func @kernel(%arg0: i32, %arg1: memref<8x16x128xbf16, #tpu.memory_space<vmem>>, %arg2: memref<2x16x128xf32, #tpu.memory_space<vmem>>, %arg3: memref<128x128xbf16, #tpu.memory_space<vmem>>, %arg4: memref<128x128xbf16, #tpu.memory_space<vmem>>, %arg5: memref<128x128xbf16, #tpu.memory_space<vmem>>, %arg6: memref<128x128xbf16, #tpu.memory_space<vmem>>, %arg7: memref<1x128xf32, #tpu.memory_space<vmem>>, %arg8: memref<1x128xf32, #tpu.memory_space<vmem>>, %arg9: memref<8x16x128xbf16, #tpu.memory_space<vmem>>, %arg10: memref<2x16x128xf32, #tpu.memory_space<vmem>>, %arg11: memref<128x128xf32, #tpu.memory_space<vmem>>) attributes {dimension_semantics = [#tpu.dimension_semantics<parallel>], iteration_bounds = array<i64: 1>, scalar_prefetch = 0 : i64, scratch_operands = 1 : i64, tpu.core_type = #tpu.core_type<tc>, window_params = [{transform_indices = @transform_0, window_bounds = array<i64: 8, 16, 128>}, {transform_indices = @transform_1, window_bounds = array<i64: 2, 16, 128>}, {pipeline_mode = #tpu.pipeline_mode<synchronous>, transform_indices = @transform_2, window_bounds = array<i64: 128, 128>}, {pipeline_mode = #tpu.pipeline_mode<synchronous>, transform_indices = @transform_3, window_bounds = array<i64: 128, 128>}, {pipeline_mode = #tpu.pipeline_mode<synchronous>, transform_indices = @transform_4, window_bounds = array<i64: 128, 128>}, {pipeline_mode = #tpu.pipeline_mode<synchronous>, transform_indices = @transform_5, window_bounds = array<i64: 128, 128>}, {pipeline_mode = #tpu.pipeline_mode<synchronous>, transform_indices = @transform_6, window_bounds = array<i64: 1, 128>}, {pipeline_mode = #tpu.pipeline_mode<synchronous>, transform_indices = @transform_7, window_bounds = array<i64: 1, 128>}, {transform_indices = @transform_8, window_bounds = array<i64: 8, 16, 128>}, {transform_indices = @transform_9, window_bounds = array<i64: 2, 16, 128>}]} {
    %c0 = arith.constant 0 : index
    %c0_0 = arith.constant 0 : index
    %0 = vector.load %arg3[%c0, %c0_0] : memref<128x128xbf16, #tpu.memory_space<vmem>>, vector<128x128xbf16>
    %c0_1 = arith.constant 0 : index
    %c0_2 = arith.constant 0 : index
    %1 = vector.load %arg5[%c0_1, %c0_2] : memref<128x128xbf16, #tpu.memory_space<vmem>>, vector<128x128xbf16>
    %c0_3 = arith.constant 0 : index
    %c0_4 = arith.constant 0 : index
    %2 = vector.load %arg7[%c0_3, %c0_4] : memref<1x128xf32, #tpu.memory_space<vmem>>, vector<1x128xf32>
    %c0_5 = arith.constant 0 : index
    %c0_6 = arith.constant 0 : index
    %c0_7 = arith.constant 0 : index
    %3 = vector.load %arg1[%c0_5, %c0_6, %c0_7] : memref<8x16x128xbf16, #tpu.memory_space<vmem>>, vector<8x16x128xbf16>
    %4 = vector.shape_cast %3 : vector<8x16x128xbf16> to vector<128x128xbf16>
    %cst = arith.constant dense<0.000000e+00> : vector<128x128xf32>
    %5 = tpu.matmul %4, %0, %cst {dimension_numbers = #tpu.dot_dimension_numbers<[1], [0], [0], [1], [0, 0, 1, 1], [], []>} : vector<128x128xbf16>, vector<128x128xbf16>, vector<128x128xf32> -> vector<128x128xf32>
    %6 = vector.broadcast %2 : vector<1x128xf32> to vector<128x128xf32>
    %7 = arith.addf %5, %6 : vector<128x128xf32>
    %c0_8 = arith.constant 0 : index
    %c0_9 = arith.constant 0 : index
    %8 = vector.load %arg11[%c0_8, %c0_9] : memref<128x128xf32, #tpu.memory_space<vmem>>, vector<128x128xf32>
    tpu.vector_store %arg11[%c0_8, %c0_9], %7 {strides = array<i32>} : memref<128x128xf32, #tpu.memory_space<vmem>>, vector<128x128xf32>,
    %c0_10 = arith.constant 0 : index
    %c0_11 = arith.constant 0 : index
    %c0_12 = arith.constant 0 : index
    %9 = vector.load %arg2[%c0_10, %c0_11, %c0_12] : memref<2x16x128xf32, #tpu.memory_space<vmem>>, vector<1x16x128xf32>
    %10 = vector.shape_cast %9 : vector<1x16x128xf32> to vector<16x128xf32>
    %c0_i32 = arith.constant 0 : i32
    %c16_i32 = arith.constant 16 : i32
    %11 = arith.muli %c0_i32, %c16_i32 : i32
    %12 = tpu.assume_multiple %11, 16 : i32
    %13 = arith.index_cast %12 : i32 to index
    %c0_13 = arith.constant 0 : index
    %14 = vector.load %arg11[%13, %c0_13] : memref<128x128xf32, #tpu.memory_space<vmem>>, vector<16x128xf32>
    %15 = arith.truncf %10 : vector<16x128xf32> to vector<16x128xbf16>
    %cst_14 = arith.constant dense<0.000000e+00> : vector<16x128xf32>
    %16 = tpu.matmul %15, %1, %cst_14 {dimension_numbers = #tpu.dot_dimension_numbers<[1], [0], [0], [1], [0, 0, 1, 1], [], []>} : vector<16x128xbf16>, vector<128x128xbf16>, vector<16x128xf32> -> vector<16x128xf32>
    %17 = arith.addf %14, %16 : vector<16x128xf32>
    %18 = math.tanh %17 : vector<16x128xf32>
    %19 = arith.truncf %18 : vector<16x128xf32> to vector<16x128xbf16>
    %20 = arith.index_cast %c0_i32 : i32 to index
    %c0_15 = arith.constant 0 : index
    %c0_16 = arith.constant 0 : index
    %21 = vector.load %arg9[%20, %c0_15, %c0_16] : memref<8x16x128xbf16, #tpu.memory_space<vmem>>, vector<1x16x128xbf16>
    %22 = vector.shape_cast %21 : vector<1x16x128xbf16> to vector<16x128xbf16>
    %23 = vector.shape_cast %19 : vector<16x128xbf16> to vector<1x16x128xbf16>
    tpu.vector_store %arg9[%20, %c0_15, %c0_16], %23 {strides = array<i32>} : memref<8x16x128xbf16, #tpu.memory_space<vmem>>, vector<1x16x128xbf16>,
    %c1_i32 = arith.constant 1 : i32
    %c16_i32_17 = arith.constant 16 : i32
    %24 = arith.muli %c1_i32, %c16_i32_17 : i32
    %25 = tpu.assume_multiple %24, 16 : i32
    %26 = arith.index_cast %25 : i32 to index
    %c0_18 = arith.constant 0 : index
    %27 = vector.load %arg11[%26, %c0_18] : memref<128x128xf32, #tpu.memory_space<vmem>>, vector<16x128xf32>
    %28 = arith.truncf %18 : vector<16x128xf32> to vector<16x128xbf16>
    %cst_19 = arith.constant dense<0.000000e+00> : vector<16x128xf32>
    %29 = tpu.matmul %28, %1, %cst_19 {dimension_numbers = #tpu.dot_dimension_numbers<[1], [0], [0], [1], [0, 0, 1, 1], [], []>} : vector<16x128xbf16>, vector<128x128xbf16>, vector<16x128xf32> -> vector<16x128xf32>
    %30 = arith.addf %27, %29 : vector<16x128xf32>
    %31 = math.tanh %30 : vector<16x128xf32>
    %32 = arith.truncf %31 : vector<16x128xf32> to vector<16x128xbf16>
    %33 = arith.index_cast %c1_i32 : i32 to index
    %c0_20 = arith.constant 0 : index
    %c0_21 = arith.constant 0 : index
    %34 = vector.load %arg9[%33, %c0_20, %c0_21] : memref<8x16x128xbf16, #tpu.memory_space<vmem>>, vector<1x16x128xbf16>
    %35 = vector.shape_cast %34 : vector<1x16x128xbf16> to vector<16x128xbf16>
    %36 = vector.shape_cast %32 : vector<16x128xbf16> to vector<1x16x128xbf16>
    tpu.vector_store %arg9[%33, %c0_20, %c0_21], %36 {strides = array<i32>} : memref<8x16x128xbf16, #tpu.memory_space<vmem>>, vector<1x16x128xbf16>,
    %c2_i32 = arith.constant 2 : i32
    %c16_i32_22 = arith.constant 16 : i32
    %37 = arith.muli %c2_i32, %c16_i32_22 : i32
    %38 = tpu.assume_multiple %37, 16 : i32
    %39 = arith.index_cast %38 : i32 to index
    %c0_23 = arith.constant 0 : index
    %40 = vector.load %arg11[%39, %c0_23] : memref<128x128xf32, #tpu.memory_space<vmem>>, vector<16x128xf32>
    %41 = arith.truncf %31 : vector<16x128xf32> to vector<16x128xbf16>
    %cst_24 = arith.constant dense<0.000000e+00> : vector<16x128xf32>
    %42 = tpu.matmul %41, %1, %cst_24 {dimension_numbers = #tpu.dot_dimension_numbers<[1], [0], [0], [1], [0, 0, 1, 1], [], []>} : vector<16x128xbf16>, vector<128x128xbf16>, vector<16x128xf32> -> vector<16x128xf32>
    %43 = arith.addf %40, %42 : vector<16x128xf32>
    %44 = math.tanh %43 : vector<16x128xf32>
    %45 = arith.truncf %44 : vector<16x128xf32> to vector<16x128xbf16>
    %46 = arith.index_cast %c2_i32 : i32 to index
    %c0_25 = arith.constant 0 : index
    %c0_26 = arith.constant 0 : index
    %47 = vector.load %arg9[%46, %c0_25, %c0_26] : memref<8x16x128xbf16, #tpu.memory_space<vmem>>, vector<1x16x128xbf16>
    %48 = vector.shape_cast %47 : vector<1x16x128xbf16> to vector<16x128xbf16>
    %49 = vector.shape_cast %45 : vector<16x128xbf16> to vector<1x16x128xbf16>
    tpu.vector_store %arg9[%46, %c0_25, %c0_26], %49 {strides = array<i32>} : memref<8x16x128xbf16, #tpu.memory_space<vmem>>, vector<1x16x128xbf16>,
    %c3_i32 = arith.constant 3 : i32
    %c16_i32_27 = arith.constant 16 : i32
    %50 = arith.muli %c3_i32, %c16_i32_27 : i32
    %51 = tpu.assume_multiple %50, 16 : i32
    %52 = arith.index_cast %51 : i32 to index
    %c0_28 = arith.constant 0 : index
    %53 = vector.load %arg11[%52, %c0_28] : memref<128x128xf32, #tpu.memory_space<vmem>>, vector<16x128xf32>
    %54 = arith.truncf %44 : vector<16x128xf32> to vector<16x128xbf16>
    %cst_29 = arith.constant dense<0.000000e+00> : vector<16x128xf32>
    %55 = tpu.matmul %54, %1, %cst_29 {dimension_numbers = #tpu.dot_dimension_numbers<[1], [0], [0], [1], [0, 0, 1, 1], [], []>} : vector<16x128xbf16>, vector<128x128xbf16>, vector<16x128xf32> -> vector<16x128xf32>
    %56 = arith.addf %53, %55 : vector<16x128xf32>
    %57 = math.tanh %56 : vector<16x128xf32>
    %58 = arith.truncf %57 : vector<16x128xf32> to vector<16x128xbf16>
    %59 = arith.index_cast %c3_i32 : i32 to index
    %c0_30 = arith.constant 0 : index
    %c0_31 = arith.constant 0 : index
    %60 = vector.load %arg9[%59, %c0_30, %c0_31] : memref<8x16x128xbf16, #tpu.memory_space<vmem>>, vector<1x16x128xbf16>
    %61 = vector.shape_cast %60 : vector<1x16x128xbf16> to vector<16x128xbf16>
    %62 = vector.shape_cast %58 : vector<16x128xbf16> to vector<1x16x128xbf16>
    tpu.vector_store %arg9[%59, %c0_30, %c0_31], %62 {strides = array<i32>} : memref<8x16x128xbf16, #tpu.memory_space<vmem>>, vector<1x16x128xbf16>,
    %c4_i32 = arith.constant 4 : i32
    %c16_i32_32 = arith.constant 16 : i32
    %63 = arith.muli %c4_i32, %c16_i32_32 : i32
    %64 = tpu.assume_multiple %63, 16 : i32
    %65 = arith.index_cast %64 : i32 to index
    %c0_33 = arith.constant 0 : index
    %66 = vector.load %arg11[%65, %c0_33] : memref<128x128xf32, #tpu.memory_space<vmem>>, vector<16x128xf32>
    %67 = arith.truncf %57 : vector<16x128xf32> to vector<16x128xbf16>
    %cst_34 = arith.constant dense<0.000000e+00> : vector<16x128xf32>
    %68 = tpu.matmul %67, %1, %cst_34 {dimension_numbers = #tpu.dot_dimension_numbers<[1], [0], [0], [1], [0, 0, 1, 1], [], []>} : vector<16x128xbf16>, vector<128x128xbf16>, vector<16x128xf32> -> vector<16x128xf32>
    %69 = arith.addf %66, %68 : vector<16x128xf32>
    %70 = math.tanh %69 : vector<16x128xf32>
    %71 = arith.truncf %70 : vector<16x128xf32> to vector<16x128xbf16>
    %72 = arith.index_cast %c4_i32 : i32 to index
    %c0_35 = arith.constant 0 : index
    %c0_36 = arith.constant 0 : index
    %73 = vector.load %arg9[%72, %c0_35, %c0_36] : memref<8x16x128xbf16, #tpu.memory_space<vmem>>, vector<1x16x128xbf16>
    %74 = vector.shape_cast %73 : vector<1x16x128xbf16> to vector<16x128xbf16>
    %75 = vector.shape_cast %71 : vector<16x128xbf16> to vector<1x16x128xbf16>
    tpu.vector_store %arg9[%72, %c0_35, %c0_36], %75 {strides = array<i32>} : memref<8x16x128xbf16, #tpu.memory_space<vmem>>, vector<1x16x128xbf16>,
    %c5_i32 = arith.constant 5 : i32
    %c16_i32_37 = arith.constant 16 : i32
    %76 = arith.muli %c5_i32, %c16_i32_37 : i32
    %77 = tpu.assume_multiple %76, 16 : i32
    %78 = arith.index_cast %77 : i32 to index
    %c0_38 = arith.constant 0 : index
    %79 = vector.load %arg11[%78, %c0_38] : memref<128x128xf32, #tpu.memory_space<vmem>>, vector<16x128xf32>
    %80 = arith.truncf %70 : vector<16x128xf32> to vector<16x128xbf16>
    %cst_39 = arith.constant dense<0.000000e+00> : vector<16x128xf32>
    %81 = tpu.matmul %80, %1, %cst_39 {dimension_numbers = #tpu.dot_dimension_numbers<[1], [0], [0], [1], [0, 0, 1, 1], [], []>} : vector<16x128xbf16>, vector<128x128xbf16>, vector<16x128xf32> -> vector<16x128xf32>
    %82 = arith.addf %79, %81 : vector<16x128xf32>
    %83 = math.tanh %82 : vector<16x128xf32>
    %84 = arith.truncf %83 : vector<16x128xf32> to vector<16x128xbf16>
    %85 = arith.index_cast %c5_i32 : i32 to index
    %c0_40 = arith.constant 0 : index
    %c0_41 = arith.constant 0 : index
    %86 = vector.load %arg9[%85, %c0_40, %c0_41] : memref<8x16x128xbf16, #tpu.memory_space<vmem>>, vector<1x16x128xbf16>
    %87 = vector.shape_cast %86 : vector<1x16x128xbf16> to vector<16x128xbf16>
    %88 = vector.shape_cast %84 : vector<16x128xbf16> to vector<1x16x128xbf16>
    tpu.vector_store %arg9[%85, %c0_40, %c0_41], %88 {strides = array<i32>} : memref<8x16x128xbf16, #tpu.memory_space<vmem>>, vector<1x16x128xbf16>,
    %c6_i32 = arith.constant 6 : i32
    %c16_i32_42 = arith.constant 16 : i32
    %89 = arith.muli %c6_i32, %c16_i32_42 : i32
    %90 = tpu.assume_multiple %89, 16 : i32
    %91 = arith.index_cast %90 : i32 to index
    %c0_43 = arith.constant 0 : index
    %92 = vector.load %arg11[%91, %c0_43] : memref<128x128xf32, #tpu.memory_space<vmem>>, vector<16x128xf32>
    %93 = arith.truncf %83 : vector<16x128xf32> to vector<16x128xbf16>
    %cst_44 = arith.constant dense<0.000000e+00> : vector<16x128xf32>
    %94 = tpu.matmul %93, %1, %cst_44 {dimension_numbers = #tpu.dot_dimension_numbers<[1], [0], [0], [1], [0, 0, 1, 1], [], []>} : vector<16x128xbf16>, vector<128x128xbf16>, vector<16x128xf32> -> vector<16x128xf32>
    %95 = arith.addf %92, %94 : vector<16x128xf32>
    %96 = math.tanh %95 : vector<16x128xf32>
    %97 = arith.truncf %96 : vector<16x128xf32> to vector<16x128xbf16>
    %98 = arith.index_cast %c6_i32 : i32 to index
    %c0_45 = arith.constant 0 : index
    %c0_46 = arith.constant 0 : index
    %99 = vector.load %arg9[%98, %c0_45, %c0_46] : memref<8x16x128xbf16, #tpu.memory_space<vmem>>, vector<1x16x128xbf16>
    %100 = vector.shape_cast %99 : vector<1x16x128xbf16> to vector<16x128xbf16>
    %101 = vector.shape_cast %97 : vector<16x128xbf16> to vector<1x16x128xbf16>
    tpu.vector_store %arg9[%98, %c0_45, %c0_46], %101 {strides = array<i32>} : memref<8x16x128xbf16, #tpu.memory_space<vmem>>, vector<1x16x128xbf16>,
    %c7_i32 = arith.constant 7 : i32
    %c16_i32_47 = arith.constant 16 : i32
    %102 = arith.muli %c7_i32, %c16_i32_47 : i32
    %103 = tpu.assume_multiple %102, 16 : i32
    %104 = arith.index_cast %103 : i32 to index
    %c0_48 = arith.constant 0 : index
    %105 = vector.load %arg11[%104, %c0_48] : memref<128x128xf32, #tpu.memory_space<vmem>>, vector<16x128xf32>
    %106 = arith.truncf %96 : vector<16x128xf32> to vector<16x128xbf16>
    %cst_49 = arith.constant dense<0.000000e+00> : vector<16x128xf32>
    %107 = tpu.matmul %106, %1, %cst_49 {dimension_numbers = #tpu.dot_dimension_numbers<[1], [0], [0], [1], [0, 0, 1, 1], [], []>} : vector<16x128xbf16>, vector<128x128xbf16>, vector<16x128xf32> -> vector<16x128xf32>
    %108 = arith.addf %105, %107 : vector<16x128xf32>
    %109 = math.tanh %108 : vector<16x128xf32>
    %110 = arith.truncf %109 : vector<16x128xf32> to vector<16x128xbf16>
    %111 = arith.index_cast %c7_i32 : i32 to index
    %c0_50 = arith.constant 0 : index
    %c0_51 = arith.constant 0 : index
    %112 = vector.load %arg9[%111, %c0_50, %c0_51] : memref<8x16x128xbf16, #tpu.memory_space<vmem>>, vector<1x16x128xbf16>
    %113 = vector.shape_cast %112 : vector<1x16x128xbf16> to vector<16x128xbf16>
    %114 = vector.shape_cast %110 : vector<16x128xbf16> to vector<1x16x128xbf16>
    tpu.vector_store %arg9[%111, %c0_50, %c0_51], %114 {strides = array<i32>} : memref<8x16x128xbf16, #tpu.memory_space<vmem>>, vector<1x16x128xbf16>,
    %c8_i32 = arith.constant 8 : i32
    %c0_52 = arith.constant 0 : index
    %c0_53 = arith.constant 0 : index
    %c0_54 = arith.constant 0 : index
    %115 = vector.load %arg10[%c0_52, %c0_53, %c0_54] : memref<2x16x128xf32, #tpu.memory_space<vmem>>, vector<1x16x128xf32>
    %116 = vector.shape_cast %115 : vector<1x16x128xf32> to vector<16x128xf32>
    %117 = vector.shape_cast %109 : vector<16x128xf32> to vector<1x16x128xf32>
    tpu.vector_store %arg10[%c0_52, %c0_53, %c0_54], %117 {strides = array<i32>} : memref<2x16x128xf32, #tpu.memory_space<vmem>>, vector<1x16x128xf32>,
    %c0_55 = arith.constant 0 : index
    %c0_56 = arith.constant 0 : index
    %118 = vector.load %arg4[%c0_55, %c0_56] : memref<128x128xbf16, #tpu.memory_space<vmem>>, vector<128x128xbf16>
    %c0_57 = arith.constant 0 : index
    %c0_58 = arith.constant 0 : index
    %119 = vector.load %arg6[%c0_57, %c0_58] : memref<128x128xbf16, #tpu.memory_space<vmem>>, vector<128x128xbf16>
    %c0_59 = arith.constant 0 : index
    %c0_60 = arith.constant 0 : index
    %120 = vector.load %arg8[%c0_59, %c0_60] : memref<1x128xf32, #tpu.memory_space<vmem>>, vector<1x128xf32>
    %c0_61 = arith.constant 0 : index
    %c0_62 = arith.constant 0 : index
    %c0_63 = arith.constant 0 : index
    %121 = vector.load %arg9[%c0_61, %c0_62, %c0_63] : memref<8x16x128xbf16, #tpu.memory_space<vmem>>, vector<8x16x128xbf16>
    %122 = vector.shape_cast %121 : vector<8x16x128xbf16> to vector<128x128xbf16>
    %cst_64 = arith.constant dense<0.000000e+00> : vector<128x128xf32>
    %123 = tpu.matmul %122, %118, %cst_64 {dimension_numbers = #tpu.dot_dimension_numbers<[1], [0], [0], [1], [0, 0, 1, 1], [], []>} : vector<128x128xbf16>, vector<128x128xbf16>, vector<128x128xf32> -> vector<128x128xf32>
    %124 = vector.broadcast %120 : vector<1x128xf32> to vector<128x128xf32>
    %125 = arith.addf %123, %124 : vector<128x128xf32>
    %c0_65 = arith.constant 0 : index
    %c0_66 = arith.constant 0 : index
    %126 = vector.load %arg11[%c0_65, %c0_66] : memref<128x128xf32, #tpu.memory_space<vmem>>, vector<128x128xf32>
    tpu.vector_store %arg11[%c0_65, %c0_66], %125 {strides = array<i32>} : memref<128x128xf32, #tpu.memory_space<vmem>>, vector<128x128xf32>,
    %c1 = arith.constant 1 : index
    %c0_67 = arith.constant 0 : index
    %c0_68 = arith.constant 0 : index
    %127 = vector.load %arg2[%c1, %c0_67, %c0_68] : memref<2x16x128xf32, #tpu.memory_space<vmem>>, vector<1x16x128xf32>
    %128 = vector.shape_cast %127 : vector<1x16x128xf32> to vector<16x128xf32>
    %c0_i32_69 = arith.constant 0 : i32
    %c16_i32_70 = arith.constant 16 : i32
    %129 = arith.muli %c0_i32_69, %c16_i32_70 : i32
    %130 = tpu.assume_multiple %129, 16 : i32
    %131 = arith.index_cast %130 : i32 to index
    %c0_71 = arith.constant 0 : index
    %132 = vector.load %arg11[%131, %c0_71] : memref<128x128xf32, #tpu.memory_space<vmem>>, vector<16x128xf32>
    %133 = arith.truncf %128 : vector<16x128xf32> to vector<16x128xbf16>
    %cst_72 = arith.constant dense<0.000000e+00> : vector<16x128xf32>
    %134 = tpu.matmul %133, %119, %cst_72 {dimension_numbers = #tpu.dot_dimension_numbers<[1], [0], [0], [1], [0, 0, 1, 1], [], []>} : vector<16x128xbf16>, vector<128x128xbf16>, vector<16x128xf32> -> vector<16x128xf32>
    %135 = arith.addf %132, %134 : vector<16x128xf32>
    %136 = math.tanh %135 : vector<16x128xf32>
    %137 = arith.truncf %136 : vector<16x128xf32> to vector<16x128xbf16>
    %138 = arith.index_cast %c0_i32_69 : i32 to index
    %c0_73 = arith.constant 0 : index
    %c0_74 = arith.constant 0 : index
    %139 = vector.load %arg9[%138, %c0_73, %c0_74] : memref<8x16x128xbf16, #tpu.memory_space<vmem>>, vector<1x16x128xbf16>
    %140 = vector.shape_cast %139 : vector<1x16x128xbf16> to vector<16x128xbf16>
    %141 = vector.shape_cast %137 : vector<16x128xbf16> to vector<1x16x128xbf16>
    tpu.vector_store %arg9[%138, %c0_73, %c0_74], %141 {strides = array<i32>} : memref<8x16x128xbf16, #tpu.memory_space<vmem>>, vector<1x16x128xbf16>,
    %c1_i32_75 = arith.constant 1 : i32
    %c16_i32_76 = arith.constant 16 : i32
    %142 = arith.muli %c1_i32_75, %c16_i32_76 : i32
    %143 = tpu.assume_multiple %142, 16 : i32
    %144 = arith.index_cast %143 : i32 to index
    %c0_77 = arith.constant 0 : index
    %145 = vector.load %arg11[%144, %c0_77] : memref<128x128xf32, #tpu.memory_space<vmem>>, vector<16x128xf32>
    %146 = arith.truncf %136 : vector<16x128xf32> to vector<16x128xbf16>
    %cst_78 = arith.constant dense<0.000000e+00> : vector<16x128xf32>
    %147 = tpu.matmul %146, %119, %cst_78 {dimension_numbers = #tpu.dot_dimension_numbers<[1], [0], [0], [1], [0, 0, 1, 1], [], []>} : vector<16x128xbf16>, vector<128x128xbf16>, vector<16x128xf32> -> vector<16x128xf32>
    %148 = arith.addf %145, %147 : vector<16x128xf32>
    %149 = math.tanh %148 : vector<16x128xf32>
    %150 = arith.truncf %149 : vector<16x128xf32> to vector<16x128xbf16>
    %151 = arith.index_cast %c1_i32_75 : i32 to index
    %c0_79 = arith.constant 0 : index
    %c0_80 = arith.constant 0 : index
    %152 = vector.load %arg9[%151, %c0_79, %c0_80] : memref<8x16x128xbf16, #tpu.memory_space<vmem>>, vector<1x16x128xbf16>
    %153 = vector.shape_cast %152 : vector<1x16x128xbf16> to vector<16x128xbf16>
    %154 = vector.shape_cast %150 : vector<16x128xbf16> to vector<1x16x128xbf16>
    tpu.vector_store %arg9[%151, %c0_79, %c0_80], %154 {strides = array<i32>} : memref<8x16x128xbf16, #tpu.memory_space<vmem>>, vector<1x16x128xbf16>,
    %c2_i32_81 = arith.constant 2 : i32
    %c16_i32_82 = arith.constant 16 : i32
    %155 = arith.muli %c2_i32_81, %c16_i32_82 : i32
    %156 = tpu.assume_multiple %155, 16 : i32
    %157 = arith.index_cast %156 : i32 to index
    %c0_83 = arith.constant 0 : index
    %158 = vector.load %arg11[%157, %c0_83] : memref<128x128xf32, #tpu.memory_space<vmem>>, vector<16x128xf32>
    %159 = arith.truncf %149 : vector<16x128xf32> to vector<16x128xbf16>
    %cst_84 = arith.constant dense<0.000000e+00> : vector<16x128xf32>
    %160 = tpu.matmul %159, %119, %cst_84 {dimension_numbers = #tpu.dot_dimension_numbers<[1], [0], [0], [1], [0, 0, 1, 1], [], []>} : vector<16x128xbf16>, vector<128x128xbf16>, vector<16x128xf32> -> vector<16x128xf32>
    %161 = arith.addf %158, %160 : vector<16x128xf32>
    %162 = math.tanh %161 : vector<16x128xf32>
    %163 = arith.truncf %162 : vector<16x128xf32> to vector<16x128xbf16>
    %164 = arith.index_cast %c2_i32_81 : i32 to index
    %c0_85 = arith.constant 0 : index
    %c0_86 = arith.constant 0 : index
    %165 = vector.load %arg9[%164, %c0_85, %c0_86] : memref<8x16x128xbf16, #tpu.memory_space<vmem>>, vector<1x16x128xbf16>
    %166 = vector.shape_cast %165 : vector<1x16x128xbf16> to vector<16x128xbf16>
    %167 = vector.shape_cast %163 : vector<16x128xbf16> to vector<1x16x128xbf16>
    tpu.vector_store %arg9[%164, %c0_85, %c0_86], %167 {strides = array<i32>} : memref<8x16x128xbf16, #tpu.memory_space<vmem>>, vector<1x16x128xbf16>,
    %c3_i32_87 = arith.constant 3 : i32
    %c16_i32_88 = arith.constant 16 : i32
    %168 = arith.muli %c3_i32_87, %c16_i32_88 : i32
    %169 = tpu.assume_multiple %168, 16 : i32
    %170 = arith.index_cast %169 : i32 to index
    %c0_89 = arith.constant 0 : index
    %171 = vector.load %arg11[%170, %c0_89] : memref<128x128xf32, #tpu.memory_space<vmem>>, vector<16x128xf32>
    %172 = arith.truncf %162 : vector<16x128xf32> to vector<16x128xbf16>
    %cst_90 = arith.constant dense<0.000000e+00> : vector<16x128xf32>
    %173 = tpu.matmul %172, %119, %cst_90 {dimension_numbers = #tpu.dot_dimension_numbers<[1], [0], [0], [1], [0, 0, 1, 1], [], []>} : vector<16x128xbf16>, vector<128x128xbf16>, vector<16x128xf32> -> vector<16x128xf32>
    %174 = arith.addf %171, %173 : vector<16x128xf32>
    %175 = math.tanh %174 : vector<16x128xf32>
    %176 = arith.truncf %175 : vector<16x128xf32> to vector<16x128xbf16>
    %177 = arith.index_cast %c3_i32_87 : i32 to index
    %c0_91 = arith.constant 0 : index
    %c0_92 = arith.constant 0 : index
    %178 = vector.load %arg9[%177, %c0_91, %c0_92] : memref<8x16x128xbf16, #tpu.memory_space<vmem>>, vector<1x16x128xbf16>
    %179 = vector.shape_cast %178 : vector<1x16x128xbf16> to vector<16x128xbf16>
    %180 = vector.shape_cast %176 : vector<16x128xbf16> to vector<1x16x128xbf16>
    tpu.vector_store %arg9[%177, %c0_91, %c0_92], %180 {strides = array<i32>} : memref<8x16x128xbf16, #tpu.memory_space<vmem>>, vector<1x16x128xbf16>,
    %c4_i32_93 = arith.constant 4 : i32
    %c16_i32_94 = arith.constant 16 : i32
    %181 = arith.muli %c4_i32_93, %c16_i32_94 : i32
    %182 = tpu.assume_multiple %181, 16 : i32
    %183 = arith.index_cast %182 : i32 to index
    %c0_95 = arith.constant 0 : index
    %184 = vector.load %arg11[%183, %c0_95] : memref<128x128xf32, #tpu.memory_space<vmem>>, vector<16x128xf32>
    %185 = arith.truncf %175 : vector<16x128xf32> to vector<16x128xbf16>
    %cst_96 = arith.constant dense<0.000000e+00> : vector<16x128xf32>
    %186 = tpu.matmul %185, %119, %cst_96 {dimension_numbers = #tpu.dot_dimension_numbers<[1], [0], [0], [1], [0, 0, 1, 1], [], []>} : vector<16x128xbf16>, vector<128x128xbf16>, vector<16x128xf32> -> vector<16x128xf32>
    %187 = arith.addf %184, %186 : vector<16x128xf32>
    %188 = math.tanh %187 : vector<16x128xf32>
    %189 = arith.truncf %188 : vector<16x128xf32> to vector<16x128xbf16>
    %190 = arith.index_cast %c4_i32_93 : i32 to index
    %c0_97 = arith.constant 0 : index
    %c0_98 = arith.constant 0 : index
    %191 = vector.load %arg9[%190, %c0_97, %c0_98] : memref<8x16x128xbf16, #tpu.memory_space<vmem>>, vector<1x16x128xbf16>
    %192 = vector.shape_cast %191 : vector<1x16x128xbf16> to vector<16x128xbf16>
    %193 = vector.shape_cast %189 : vector<16x128xbf16> to vector<1x16x128xbf16>
    tpu.vector_store %arg9[%190, %c0_97, %c0_98], %193 {strides = array<i32>} : memref<8x16x128xbf16, #tpu.memory_space<vmem>>, vector<1x16x128xbf16>,
    %c5_i32_99 = arith.constant 5 : i32
    %c16_i32_100 = arith.constant 16 : i32
    %194 = arith.muli %c5_i32_99, %c16_i32_100 : i32
    %195 = tpu.assume_multiple %194, 16 : i32
    %196 = arith.index_cast %195 : i32 to index
    %c0_101 = arith.constant 0 : index
    %197 = vector.load %arg11[%196, %c0_101] : memref<128x128xf32, #tpu.memory_space<vmem>>, vector<16x128xf32>
    %198 = arith.truncf %188 : vector<16x128xf32> to vector<16x128xbf16>
    %cst_102 = arith.constant dense<0.000000e+00> : vector<16x128xf32>
    %199 = tpu.matmul %198, %119, %cst_102 {dimension_numbers = #tpu.dot_dimension_numbers<[1], [0], [0], [1], [0, 0, 1, 1], [], []>} : vector<16x128xbf16>, vector<128x128xbf16>, vector<16x128xf32> -> vector<16x128xf32>
    %200 = arith.addf %197, %199 : vector<16x128xf32>
    %201 = math.tanh %200 : vector<16x128xf32>
    %202 = arith.truncf %201 : vector<16x128xf32> to vector<16x128xbf16>
    %203 = arith.index_cast %c5_i32_99 : i32 to index
    %c0_103 = arith.constant 0 : index
    %c0_104 = arith.constant 0 : index
    %204 = vector.load %arg9[%203, %c0_103, %c0_104] : memref<8x16x128xbf16, #tpu.memory_space<vmem>>, vector<1x16x128xbf16>
    %205 = vector.shape_cast %204 : vector<1x16x128xbf16> to vector<16x128xbf16>
    %206 = vector.shape_cast %202 : vector<16x128xbf16> to vector<1x16x128xbf16>
    tpu.vector_store %arg9[%203, %c0_103, %c0_104], %206 {strides = array<i32>} : memref<8x16x128xbf16, #tpu.memory_space<vmem>>, vector<1x16x128xbf16>,
    %c6_i32_105 = arith.constant 6 : i32
    %c16_i32_106 = arith.constant 16 : i32
    %207 = arith.muli %c6_i32_105, %c16_i32_106 : i32
    %208 = tpu.assume_multiple %207, 16 : i32
    %209 = arith.index_cast %208 : i32 to index
    %c0_107 = arith.constant 0 : index
    %210 = vector.load %arg11[%209, %c0_107] : memref<128x128xf32, #tpu.memory_space<vmem>>, vector<16x128xf32>
    %211 = arith.truncf %201 : vector<16x128xf32> to vector<16x128xbf16>
    %cst_108 = arith.constant dense<0.000000e+00> : vector<16x128xf32>
    %212 = tpu.matmul %211, %119, %cst_108 {dimension_numbers = #tpu.dot_dimension_numbers<[1], [0], [0], [1], [0, 0, 1, 1], [], []>} : vector<16x128xbf16>, vector<128x128xbf16>, vector<16x128xf32> -> vector<16x128xf32>
    %213 = arith.addf %210, %212 : vector<16x128xf32>
    %214 = math.tanh %213 : vector<16x128xf32>
    %215 = arith.truncf %214 : vector<16x128xf32> to vector<16x128xbf16>
    %216 = arith.index_cast %c6_i32_105 : i32 to index
    %c0_109 = arith.constant 0 : index
    %c0_110 = arith.constant 0 : index
    %217 = vector.load %arg9[%216, %c0_109, %c0_110] : memref<8x16x128xbf16, #tpu.memory_space<vmem>>, vector<1x16x128xbf16>
    %218 = vector.shape_cast %217 : vector<1x16x128xbf16> to vector<16x128xbf16>
    %219 = vector.shape_cast %215 : vector<16x128xbf16> to vector<1x16x128xbf16>
    tpu.vector_store %arg9[%216, %c0_109, %c0_110], %219 {strides = array<i32>} : memref<8x16x128xbf16, #tpu.memory_space<vmem>>, vector<1x16x128xbf16>,
    %c7_i32_111 = arith.constant 7 : i32
    %c16_i32_112 = arith.constant 16 : i32
    %220 = arith.muli %c7_i32_111, %c16_i32_112 : i32
    %221 = tpu.assume_multiple %220, 16 : i32
    %222 = arith.index_cast %221 : i32 to index
    %c0_113 = arith.constant 0 : index
    %223 = vector.load %arg11[%222, %c0_113] : memref<128x128xf32, #tpu.memory_space<vmem>>, vector<16x128xf32>
    %224 = arith.truncf %214 : vector<16x128xf32> to vector<16x128xbf16>
    %cst_114 = arith.constant dense<0.000000e+00> : vector<16x128xf32>
    %225 = tpu.matmul %224, %119, %cst_114 {dimension_numbers = #tpu.dot_dimension_numbers<[1], [0], [0], [1], [0, 0, 1, 1], [], []>} : vector<16x128xbf16>, vector<128x128xbf16>, vector<16x128xf32> -> vector<16x128xf32>
    %226 = arith.addf %223, %225 : vector<16x128xf32>
    %227 = math.tanh %226 : vector<16x128xf32>
    %228 = arith.truncf %227 : vector<16x128xf32> to vector<16x128xbf16>
    %229 = arith.index_cast %c7_i32_111 : i32 to index
    %c0_115 = arith.constant 0 : index
    %c0_116 = arith.constant 0 : index
    %230 = vector.load %arg9[%229, %c0_115, %c0_116] : memref<8x16x128xbf16, #tpu.memory_space<vmem>>, vector<1x16x128xbf16>
    %231 = vector.shape_cast %230 : vector<1x16x128xbf16> to vector<16x128xbf16>
    %232 = vector.shape_cast %228 : vector<16x128xbf16> to vector<1x16x128xbf16>
    tpu.vector_store %arg9[%229, %c0_115, %c0_116], %232 {strides = array<i32>} : memref<8x16x128xbf16, #tpu.memory_space<vmem>>, vector<1x16x128xbf16>,
    %c8_i32_117 = arith.constant 8 : i32
    %c1_118 = arith.constant 1 : index
    %c0_119 = arith.constant 0 : index
    %c0_120 = arith.constant 0 : index
    %233 = vector.load %arg10[%c1_118, %c0_119, %c0_120] : memref<2x16x128xf32, #tpu.memory_space<vmem>>, vector<1x16x128xf32>
    %234 = vector.shape_cast %233 : vector<1x16x128xf32> to vector<16x128xf32>
    %235 = vector.shape_cast %227 : vector<16x128xf32> to vector<1x16x128xf32>
    tpu.vector_store %arg10[%c1_118, %c0_119, %c0_120], %235 {strides = array<i32>} : memref<2x16x128xf32, #tpu.memory_space<vmem>>, vector<1x16x128xf32>,
    return
  }
  func.func @transform_0(%arg0: i32) -> (i32, i32, i32) {
    %c0_i32 = arith.constant 0 : i32
    %c0_i32_0 = arith.constant 0 : i32
    %c0_i32_1 = arith.constant 0 : i32
    return %c0_i32, %arg0, %c0_i32_0 : i32, i32, i32
  }
  func.func @transform_1(%arg0: i32) -> (i32, i32, i32) {
    %c0_i32 = arith.constant 0 : i32
    %c0_i32_0 = arith.constant 0 : i32
    %c0_i32_1 = arith.constant 0 : i32
    return %c0_i32, %arg0, %c0_i32_0 : i32, i32, i32
  }
  func.func @transform_2(%arg0: i32) -> (i32, i32) {
    %c0_i32 = arith.constant 0 : i32
    %c0_i32_0 = arith.constant 0 : i32
    %c0_i32_1 = arith.constant 0 : i32
    return %c0_i32, %c0_i32_0 : i32, i32
  }
  func.func @transform_3(%arg0: i32) -> (i32, i32) {
    %c0_i32 = arith.constant 0 : i32
    %c0_i32_0 = arith.constant 0 : i32
    %c0_i32_1 = arith.constant 0 : i32
    return %c0_i32, %c0_i32_0 : i32, i32
  }
  func.func @transform_4(%arg0: i32) -> (i32, i32) {
    %c0_i32 = arith.constant 0 : i32
    %c0_i32_0 = arith.constant 0 : i32
    %c0_i32_1 = arith.constant 0 : i32
    return %c0_i32, %c0_i32_0 : i32, i32
  }
  func.func @transform_5(%arg0: i32) -> (i32, i32) {
    %c0_i32 = arith.constant 0 : i32
    %c0_i32_0 = arith.constant 0 : i32
    %c0_i32_1 = arith.constant 0 : i32
    return %c0_i32, %c0_i32_0 : i32, i32
  }
  func.func @transform_6(%arg0: i32) -> (i32, i32) {
    %c0_i32 = arith.constant 0 : i32
    %c0_i32_0 = arith.constant 0 : i32
    %c0_i32_1 = arith.constant 0 : i32
    return %c0_i32, %c0_i32_0 : i32, i32
  }
  func.func @transform_7(%arg0: i32) -> (i32, i32) {
    %c0_i32 = arith.constant 0 : i32
    %c0_i32_0 = arith.constant 0 : i32
    %c0_i32_1 = arith.constant 0 : i32
    return %c0_i32, %c0_i32_0 : i32, i32
  }
  func.func @transform_8(%arg0: i32) -> (i32, i32, i32) {
    %c0_i32 = arith.constant 0 : i32
    %c0_i32_0 = arith.constant 0 : i32
    %c0_i32_1 = arith.constant 0 : i32
    return %c0_i32, %arg0, %c0_i32_0 : i32, i32, i32
  }
  func.func @transform_9(%arg0: i32) -> (i32, i32, i32) {
    %c0_i32 = arith.constant 0 : i32
    %c0_i32_0 = arith.constant 0 : i32
    %c0_i32_1 = arith.constant 0 : i32
    return %c0_i32, %arg0, %c0_i32_0 : i32, i32, i32
  }
}

</mosaic_0001>

<llo_original>
// kernel: tpu_custom_call.1
$region0: #{tpu_custom_call.1}
  #allocation0 [shape = 'u32[]', space=smem, size = 0x4, offset = 0x4, fixed_abs, tag = 'smem constant byte address 0x4 - core index']
  #allocation1 [shape = 'u32[72,128]{1,0:T(1,128)}', space=vmem, size = 0x9000, scoped, tag = 'internal scratch']
  #allocation2 [shape = 'f32[128,128]{1,0:T(8,128)}', space=vmem, size = 0x10000, scoped, tag = 'scratch operand']
  %s0 = inlined_call_operand.hbm [shape: bf16[8,16,128], index: 0, kind: input, shape index: {}]
  %s1 = inlined_call_operand.hbm [shape: f32[2,16,128], index: 1, kind: input, shape index: {}]
  %s2 = inlined_call_operand.hbm [shape: bf16[128,128], index: 2, kind: input, shape index: {}]
  %s3 = inlined_call_operand.hbm [shape: bf16[128,128], index: 3, kind: input, shape index: {}]
  %s4 = inlined_call_operand.hbm [shape: bf16[128,128], index: 4, kind: input, shape index: {}]
  %s5 = inlined_call_operand.hbm [shape: bf16[128,128], index: 5, kind: input, shape index: {}]
  %s6 = inlined_call_operand.vmem [shape: f32[1,128], index: 6, kind: input, shape index: {}]
  %s7 = inlined_call_operand.vmem [shape: f32[1,128], index: 7, kind: input, shape index: {}]
  %s8 = inlined_call_operand.hbm [shape: bf16[8,16,128], index: 8, kind: output, shape index: {0}]
  %s9 = inlined_call_operand.hbm [shape: f32[2,16,128], index: 9, kind: output, shape index: {1}]
  %10 = xla_tuple %s8, %s9
  %s11 = sld [smem:[#allocation0]]
  $region74: #{tpu_custom_call.1} parent=0
    _
  %s13 = ssub.s32 1, %s11
  %s14 = scalar_select 0, %s13, %s11
  $region1: #{tpu_custom_call.1} parent=0
    #allocation3 [shape = 'u8[32768]{0}', space=vmem, size = 0x8000, scoped, tag = 'input window, operand 0, single buffered']
    #allocation4 [shape = 's32[1]{0}', space=sflag, size = 0x4, scoped, tag = 'scoped memory for tpu_custom_call.1']
    #allocation5 [shape = 's32[1]{0}', space=sflag, size = 0x4, scoped, tag = 'scoped memory for tpu_custom_call.1']
    #allocation6 [shape = 'u8[16384]{0}', space=vmem, size = 0x4000, scoped, tag = 'input window, operand 1, single buffered']
    #allocation7 [shape = 's32[1]{0}', space=sflag, size = 0x4, scoped, tag = 'scoped memory for tpu_custom_call.1']
    #allocation8 [shape = 'u8[32768]{0}', space=vmem, size = 0x8000, scoped, tag = 'input window, operand 2, single buffered']
    #allocation9 [shape = 'u8[32768]{0}', space=vmem, size = 0x8000, scoped, tag = 'input window, operand 3, single buffered']
    #allocation10 [shape = 's32[1]{0}', space=sflag, size = 0x4, scoped, tag = 'scoped memory for tpu_custom_call.1']
    #allocation11 [shape = 'u8[32768]{0}', space=vmem, size = 0x8000, scoped, tag = 'input window, operand 4, single buffered']
    #allocation12 [shape = 'u8[32768]{0}', space=vmem, size = 0x8000, scoped, tag = 'input window, operand 5, single buffered']
    #allocation13 [shape = 's32[1]{0}', space=sflag, size = 0x4, scoped, tag = 'scoped memory for tpu_custom_call.1']
    #allocation14 [shape = 'u8[32768]{0}', space=vmem, size = 0x8000, scoped, tag = 'output window, operand 0, single buffered']
    #allocation15 [shape = 'u8[16384]{0}', space=vmem, size = 0x4000, scoped, tag = 'output window, operand 1, single buffered']
    #allocation16 [shape = 's32[1]{0}', space=sflag, size = 0x4, scoped, tag = 'scoped memory for tpu_custom_call.1']
    %15 = vsyncpa [#allocation4], 0
    %16 = vsyncpa [#allocation7], 0
    %17 = vsyncpa [#allocation10], 0
    %18 = vsyncpa [#allocation13], 0
    %19 = vsyncpa [#allocation5], 0
    %20 = vsyncpa [#allocation16], 0
    // Predicated region
    $region2: #{tpu_custom_call.1} parent=1 // pred_check
      _
    $region3: #{tpu_custom_call.1} parent=1 // pred_check_branch
      %22 = sbr.rel (0) target = $region5
    $region4: #{tpu_custom_call.1} parent=1 // pred_region
      %24 = vsyncadd [#allocation4], 0
      %s25 = sshll.u32 %s0, 4
      %s26 = int_to_ptr.hbm [resolvable:$true] %s25
      %s27 = sshll.u32 [#allocation3], 4
      %s28 = int_to_ptr.vmem [resolvable:$true] %s27
      %33 = dma.hbm_to_vmem [thread:$0]  %s26, 1024, %s28, [#allocation4], 64, 64, 4
    $region5: #{tpu_custom_call.1} parent=1 // pred_fallthru
      _
    // Predicated region
    $region6: #{tpu_custom_call.1} parent=1 // pred_check
      _
    $region7: #{tpu_custom_call.1} parent=1 // pred_check_branch
      %35 = sbr.rel (0) target = $region9
    $region8: #{tpu_custom_call.1} parent=1 // pred_region
      %37 = vsyncadd [#allocation7], 0
      %s38 = sshll.u32 %s1, 4
      %s39 = int_to_ptr.hbm [resolvable:$true] %s38
      %s40 = sshll.u32 [#allocation6], 4
      %s41 = int_to_ptr.vmem [resolvable:$true] %s40
      %46 = dma.hbm_to_vmem [thread:$0]  %s39, 512, %s41, [#allocation7], 128, 128, 8
    $region9: #{tpu_custom_call.1} parent=1 // pred_fallthru
      _
    // Predicated region
    $region10: #{tpu_custom_call.1} parent=1 // pred_check
      _
    $region11: #{tpu_custom_call.1} parent=1 // pred_check_branch
      %48 = sbr.rel (0) target = $region13
    $region12: #{tpu_custom_call.1} parent=1 // pred_region
      %50 = vsyncadd [#allocation7], 0
      %s51 = sshll.u32 %s2, 4
      %s52 = int_to_ptr.hbm [resolvable:$true] %s51
      %s53 = sshll.u32 [#allocation8], 4
      %s54 = int_to_ptr.vmem [resolvable:$true] %s53
      %59 = dma.hbm_to_vmem [thread:$0]  %s52, 1024, %s54, [#allocation7], 64, 64, 4
    $region13: #{tpu_custom_call.1} parent=1 // pred_fallthru
      _
    // Predicated region
    $region14: #{tpu_custom_call.1} parent=1 // pred_check
      _
    $region15: #{tpu_custom_call.1} parent=1 // pred_check_branch
      %61 = sbr.rel (0) target = $region17
    $region16: #{tpu_custom_call.1} parent=1 // pred_region
      %63 = vsyncadd [#allocation10], 0
      %s64 = sshll.u32 %s3, 4
      %s65 = int_to_ptr.hbm [resolvable:$true] %s64
      %s66 = sshll.u32 [#allocation9], 4
      %s67 = int_to_ptr.vmem [resolvable:$true] %s66
      %72 = dma.hbm_to_vmem [thread:$0]  %s65, 1024, %s67, [#allocation10], 64, 64, 4
    $region17: #{tpu_custom_call.1} parent=1 // pred_fallthru
      _
    // Predicated region
    $region18: #{tpu_custom_call.1} parent=1 // pred_check
      _
    $region19: #{tpu_custom_call.1} parent=1 // pred_check_branch
      %74 = sbr.rel (0) target = $region21
    $region20: #{tpu_custom_call.1} parent=1 // pred_region
      %76 = vsyncadd [#allocation10], 0
      %s77 = sshll.u32 %s4, 4
      %s78 = int_to_ptr.hbm [resolvable:$true] %s77
      %s79 = sshll.u32 [#allocation11], 4
      %s80 = int_to_ptr.vmem [resolvable:$true] %s79
      %85 = dma.hbm_to_vmem [thread:$0]  %s78, 1024, %s80, [#allocation10], 64, 64, 4
    $region21: #{tpu_custom_call.1} parent=1 // pred_fallthru
      _
    // Predicated region
    $region22: #{tpu_custom_call.1} parent=1 // pred_check
      _
    $region23: #{tpu_custom_call.1} parent=1 // pred_check_branch
      %87 = sbr.rel (0) target = $region25
    $region24: #{tpu_custom_call.1} parent=1 // pred_region
      %89 = vsyncadd [#allocation13], 0
      %s90 = sshll.u32 %s5, 4
      %s91 = int_to_ptr.hbm [resolvable:$true] %s90
      %s92 = sshll.u32 [#allocation12], 4
      %s93 = int_to_ptr.vmem [resolvable:$true] %s92
      %98 = dma.hbm_to_vmem [thread:$0]  %s91, 1024, %s93, [#allocation13], 64, 64, 4
    $region25: #{tpu_custom_call.1} parent=1 // pred_fallthru
      _
    // Predicated region
    $region26: #{tpu_custom_call.1} parent=1 // pred_check
      _
    $region27: #{tpu_custom_call.1} parent=1 // pred_check_branch
      %100 = sbr.rel (0) target = $region29
    $region28: #{tpu_custom_call.1} parent=1 // pred_region
      _
    $region29: #{tpu_custom_call.1} parent=1 // pred_fallthru
      _
    // Predicated region
    $region30: #{tpu_custom_call.1} parent=1 // pred_check
      _
    $region31: #{tpu_custom_call.1} parent=1 // pred_check_branch
      %102 = sbr.rel (0) target = $region33
    $region32: #{tpu_custom_call.1} parent=1 // pred_region
      _
    $region33: #{tpu_custom_call.1} parent=1 // pred_fallthru
      _
    // Predicated region
    $region34: #{tpu_custom_call.1} parent=1 // pred_check
      _
    $region35: #{tpu_custom_call.1} parent=1 // pred_check_branch
      %104 = sbr.rel (0) target = $region37
    $region36: #{tpu_custom_call.1} parent=1 // pred_region
      %106 = dma.done [#allocation4], 1024
    $region37: #{tpu_custom_call.1} parent=1 // pred_fallthru
      _
    // Predicated region
    $region38: #{tpu_custom_call.1} parent=1 // pred_check
      _
    $region39: #{tpu_custom_call.1} parent=1 // pred_check_branch
      %108 = sbr.rel (0) target = $region41
    $region40: #{tpu_custom_call.1} parent=1 // pred_region
      %110 = dma.done [#allocation7], 512
    $region41: #{tpu_custom_call.1} parent=1 // pred_fallthru
      _
    // Predicated region
    $region42: #{tpu_custom_call.1} parent=1 // pred_check
      _
    $region43: #{tpu_custom_call.1} parent=1 // pred_check_branch
      %112 = sbr.rel (0) target = $region45
    $region44: #{tpu_custom_call.1} parent=1 // pred_region
      %114 = dma.done [#allocation7], 1024
    $region45: #{tpu_custom_call.1} parent=1 // pred_fallthru
      _
    // Predicated region
    $region46: #{tpu_custom_call.1} parent=1 // pred_check
      _
    $region47: #{tpu_custom_call.1} parent=1 // pred_check_branch
      %116 = sbr.rel (0) target = $region49
    $region48: #{tpu_custom_call.1} parent=1 // pred_region
      %118 = dma.done [#allocation10], 1024
    $region49: #{tpu_custom_call.1} parent=1 // pred_fallthru
      _
    // Predicated region
    $region50: #{tpu_custom_call.1} parent=1 // pred_check
      _
    $region51: #{tpu_custom_call.1} parent=1 // pred_check_branch
      %120 = sbr.rel (0) target = $region53
    $region52: #{tpu_custom_call.1} parent=1 // pred_region
      %122 = dma.done [#allocation10], 1024
    $region53: #{tpu_custom_call.1} parent=1 // pred_fallthru
      _
    // Predicated region
    $region54: #{tpu_custom_call.1} parent=1 // pred_check
      _
    $region55: #{tpu_custom_call.1} parent=1 // pred_check_branch
      %124 = sbr.rel (0) target = $region57
    $region56: #{tpu_custom_call.1} parent=1 // pred_region
      %126 = dma.done [#allocation13], 1024
    $region57: #{tpu_custom_call.1} parent=1 // pred_fallthru
      _
    %v127 = vld [vmem:[#allocation8] sm:$0xf]
    %v128 = vld [vmem:[#allocation8 + $0x4] sm:$0xf]
    %v129 = vld [vmem:[#allocation8 + $0x8] sm:$0xf]
    %v130 = vld [vmem:[#allocation8 + $0xc] sm:$0xf]
    %v131 = vld [vmem:[#allocation8 + $0x10] sm:$0xf]
    %v132 = vld [vmem:[#allocation8 + $0x14] sm:$0xf]
    %v133 = vld [vmem:[#allocation8 + $0x18] sm:$0xf]
    %v134 = vld [vmem:[#allocation8 + $0x1c] sm:$0xf]
    %v135 = vld [vmem:[#allocation8 + $0x20] sm:$0xf]
    %v136 = vld [vmem:[#allocation8 + $0x24] sm:$0xf]
    %v137 = vld [vmem:[#allocation8 + $0x28] sm:$0xf]
    %v138 = vld [vmem:[#allocation8 + $0x2c] sm:$0xf]
    %v139 = vld [vmem:[#allocation8 + $0x30] sm:$0xf]
    %v140 = vld [vmem:[#allocation8 + $0x34] sm:$0xf]
    %v141 = vld [vmem:[#allocation8 + $0x38] sm:$0xf]
    %v142 = vld [vmem:[#allocation8 + $0x3c] sm:$0xf]
    %v143 = vld [vmem:[#allocation11] sm:$0xf]
    %v144 = vld [vmem:[#allocation11 + $0x4] sm:$0xf]
    %v145 = vld [vmem:[#allocation11 + $0x8] sm:$0xf]
    %v146 = vld [vmem:[#allocation11 + $0xc] sm:$0xf]
    %v147 = vld [vmem:[#allocation11 + $0x10] sm:$0xf]
    %v148 = vld [vmem:[#allocation11 + $0x14] sm:$0xf]
    %v149 = vld [vmem:[#allocation11 + $0x18] sm:$0xf]
    %v150 = vld [vmem:[#allocation11 + $0x1c] sm:$0xf]
    %v151 = vld [vmem:[#allocation11 + $0x20] sm:$0xf]
    %v152 = vld [vmem:[#allocation11 + $0x24] sm:$0xf]
    %v153 = vld [vmem:[#allocation11 + $0x28] sm:$0xf]
    %v154 = vld [vmem:[#allocation11 + $0x2c] sm:$0xf]
    %v155 = vld [vmem:[#allocation11 + $0x30] sm:$0xf]
    %v156 = vld [vmem:[#allocation11 + $0x34] sm:$0xf]
    %v157 = vld [vmem:[#allocation11 + $0x38] sm:$0xf]
    %v158 = vld [vmem:[#allocation11 + $0x3c] sm:$0xf]
    %v159 = vld [vmem:[%s6] sm:$0x1]
    %v160 = vld [vmem:[#allocation3] sm:$0xf]
    %v161 = vld [vmem:[#allocation3 + $0x4] sm:$0xf]
    %v162 = vld [vmem:[#allocation3 + $0x8] sm:$0xf]
    %v163 = vld [vmem:[#allocation3 + $0xc] sm:$0xf]
    %v164 = vld [vmem:[#allocation3 + $0x10] sm:$0xf]
    %v165 = vld [vmem:[#allocation3 + $0x14] sm:$0xf]
    %v166 = vld [vmem:[#allocation3 + $0x18] sm:$0xf]
    %v167 = vld [vmem:[#allocation3 + $0x1c] sm:$0xf]
    %v168 = vld [vmem:[#allocation3 + $0x20] sm:$0xf]
    %v169 = vld [vmem:[#allocation3 + $0x24] sm:$0xf]
    %v170 = vld [vmem:[#allocation3 + $0x28] sm:$0xf]
    %v171 = vld [vmem:[#allocation3 + $0x2c] sm:$0xf]
    %v172 = vld [vmem:[#allocation3 + $0x30] sm:$0xf]
    %v173 = vld [vmem:[#allocation3 + $0x34] sm:$0xf]
    %v174 = vld [vmem:[#allocation3 + $0x38] sm:$0xf]
    %v175 = vld [vmem:[#allocation3 + $0x3c] sm:$0xf]
    %v177 = vperm.slane %v159, 0
    %v195 = vunpack.c.l.b16 %v160
    %v196 = vunpack.c.l.b16 %v161
    %v197 = vunpack.c.l.b16 %v162
    %v198 = vunpack.c.l.b16 %v163
    %v199 = vunpack.c.l.b16 %v164
    %v200 = vunpack.c.l.b16 %v165
    %v201 = vunpack.c.l.b16 %v166
    %v202 = vunpack.c.l.b16 %v167
    %v203 = vunpack.c.l.b16 %v168
    %v204 = vunpack.c.l.b16 %v169
    %v205 = vunpack.c.l.b16 %v170
    %v206 = vunpack.c.l.b16 %v171
    %v207 = vunpack.c.l.b16 %v172
    %v208 = vunpack.c.l.b16 %v173
    %v209 = vunpack.c.l.b16 %v174
    %v210 = vunpack.c.l.b16 %v175
    %v211 = vpack.c.b16 %v196, %v195
    %v212 = vpack.c.b16 %v198, %v197
    %v213 = vpack.c.b16 %v200, %v199
    %v214 = vpack.c.b16 %v202, %v201
    %v215 = vpack.c.b16 %v204, %v203
    %v216 = vpack.c.b16 %v206, %v205
    %v217 = vpack.c.b16 %v208, %v207
    %v218 = vpack.c.b16 %v210, %v209
    %v243 = vunpack.c.l.b16 %v127
    %v244 = vunpack.c.l.b16 %v128
    %v245 = vunpack.c.l.b16 %v129
    %v246 = vunpack.c.l.b16 %v130
    %v247 = vunpack.c.l.b16 %v131
    %v248 = vunpack.c.l.b16 %v132
    %v249 = vunpack.c.l.b16 %v133
    %v250 = vunpack.c.l.b16 %v134
    %v251 = vunpack.c.l.b16 %v135
    %v252 = vunpack.c.l.b16 %v136
    %v253 = vunpack.c.l.b16 %v137
    %v254 = vunpack.c.l.b16 %v138
    %v255 = vunpack.c.l.b16 %v139
    %v256 = vunpack.c.l.b16 %v140
    %v257 = vunpack.c.l.b16 %v141
    %v258 = vunpack.c.l.b16 %v142
    %v259 = vpack.c.b16 %v244, %v243
    %v260 = vpack.c.b16 %v246, %v245
    %v261 = vpack.c.b16 %v248, %v247
    %v262 = vpack.c.b16 %v250, %v249
    %v263 = vpack.c.b16 %v252, %v251
    %v264 = vpack.c.b16 %v254, %v253
    %v265 = vpack.c.b16 %v256, %v255
    %v266 = vpack.c.b16 %v258, %v257
    %275 = vmatpush.bf16.msra.mxu0 %v266
    %276 = vmatpush.bf16.msra.mxu0 %v265
    %277 = vmatpush.bf16.msra.mxu0 %v264
    %278 = vmatpush.bf16.msra.mxu0 %v263
    %279 = vmatpush.bf16.msra.mxu0 %v262
    %280 = vmatpush.bf16.msra.mxu0 %v261
    %281 = vmatpush.bf16.msra.mxu0 %v260
    %282 = vmatpush.bf16.msra.mxu0 %v259
    %283 = vmatmul.bf16.gmra.mxu0 %v211
    %v284 = vpop.f32.mrf.mxu0
    %v285 = vadd.f32 %v177, %v284
    %v286 = vpop.f32.mrf.mxu0
    %v287 = vadd.f32 %v177, %v286
    %288 = vmatmul.bf16.gmra.mxu0 %v212
    %v289 = vpop.f32.mrf.mxu0
    %v290 = vadd.f32 %v177, %v289
    %v291 = vpop.f32.mrf.mxu0
    %v292 = vadd.f32 %v177, %v291
    %293 = vmatmul.bf16.gmra.mxu0 %v213
    %v294 = vpop.f32.mrf.mxu0
    %v295 = vadd.f32 %v177, %v294
    %v296 = vpop.f32.mrf.mxu0
    %v297 = vadd.f32 %v177, %v296
    %298 = vmatmul.bf16.gmra.mxu0 %v214
    %v299 = vpop.f32.mrf.mxu0
    %v300 = vadd.f32 %v177, %v299
    %v301 = vpop.f32.mrf.mxu0
    %v302 = vadd.f32 %v177, %v301
    %303 = vmatmul.bf16.gmra.mxu0 %v215
    %v304 = vpop.f32.mrf.mxu0
    %v305 = vadd.f32 %v177, %v304
    %v306 = vpop.f32.mrf.mxu0
    %v307 = vadd.f32 %v177, %v306
    %308 = vmatmul.bf16.gmra.mxu0 %v216
    %v309 = vpop.f32.mrf.mxu0
    %v310 = vadd.f32 %v177, %v309
    %v311 = vpop.f32.mrf.mxu0
    %v312 = vadd.f32 %v177, %v311
    %313 = vmatmul.bf16.gmra.mxu0 %v217
    %v314 = vpop.f32.mrf.mxu0
    %v315 = vadd.f32 %v177, %v314
    %v316 = vpop.f32.mrf.mxu0
    %v317 = vadd.f32 %v177, %v316
    %318 = vmatmul.bf16.gmra.mxu0 %v218
    %v319 = vpop.f32.mrf.mxu0
    %v320 = vadd.f32 %v177, %v319
    %v321 = vpop.f32.mrf.mxu0
    %v322 = vadd.f32 %v177, %v321
    %323 = vdwg.mxu0
    %324 = vst [vmem:[#allocation2] sm:$0xff] %v285
    %325 = vst [vmem:[#allocation2 + $0x8] sm:$0xff] %v287
    %326 = vst [vmem:[#allocation2 + $0x10] sm:$0xff] %v290
    %327 = vst [vmem:[#allocation2 + $0x18] sm:$0xff] %v292
    %328 = vst [vmem:[#allocation2 + $0x20] sm:$0xff] %v295
    %329 = vst [vmem:[#allocation2 + $0x28] sm:$0xff] %v297
    %330 = vst [vmem:[#allocation2 + $0x30] sm:$0xff] %v300
    %331 = vst [vmem:[#allocation2 + $0x38] sm:$0xff] %v302
    %332 = vst [vmem:[#allocation2 + $0x40] sm:$0xff] %v305
    %333 = vst [vmem:[#allocation2 + $0x48] sm:$0xff] %v307
    %334 = vst [vmem:[#allocation2 + $0x50] sm:$0xff] %v310
    %335 = vst [vmem:[#allocation2 + $0x58] sm:$0xff] %v312
    %336 = vst [vmem:[#allocation2 + $0x60] sm:$0xff] %v315
    %337 = vst [vmem:[#allocation2 + $0x68] sm:$0xff] %v317
    %338 = vst [vmem:[#allocation2 + $0x70] sm:$0xff] %v320
    %339 = vst [vmem:[#allocation2 + $0x78] sm:$0xff] %v322
    %v340 = vld [vmem:[#allocation6] sm:$0xff]
    %v341 = vld [vmem:[#allocation6 + $0x8] sm:$0xff]
    %v342 = vld [vmem:[#allocation2] sm:$0xff]
    %v343 = vld [vmem:[#allocation2 + $0x8] sm:$0xff]
    %v344 = vpack.c.bf16 %v341, %v340
    %v361 = vunpack.c.l.b16 %v143
    %v362 = vunpack.c.l.b16 %v144
    %v363 = vunpack.c.l.b16 %v145
    %v364 = vunpack.c.l.b16 %v146
    %v365 = vunpack.c.l.b16 %v147
    %v366 = vunpack.c.l.b16 %v148
    %v367 = vunpack.c.l.b16 %v149
    %v368 = vunpack.c.l.b16 %v150
    %v369 = vunpack.c.l.b16 %v151
    %v370 = vunpack.c.l.b16 %v152
    %v371 = vunpack.c.l.b16 %v153
    %v372 = vunpack.c.l.b16 %v154
    %v373 = vunpack.c.l.b16 %v155
    %v374 = vunpack.c.l.b16 %v156
    %v375 = vunpack.c.l.b16 %v157
    %v376 = vunpack.c.l.b16 %v158
    %v377 = vpack.c.b16 %v362, %v361
    %v378 = vpack.c.b16 %v364, %v363
    %v379 = vpack.c.b16 %v366, %v365
    %v380 = vpack.c.b16 %v368, %v367
    %v381 = vpack.c.b16 %v370, %v369
    %v382 = vpack.c.b16 %v372, %v371
    %v383 = vpack.c.b16 %v374, %v373
    %v384 = vpack.c.b16 %v376, %v375
    %393 = vmatpush.bf16.msra.mxu0 %v384
    %394 = vmatpush.bf16.msra.mxu0 %v383
    %395 = vmatpush.bf16.msra.mxu0 %v382
    %396 = vmatpush.bf16.msra.mxu0 %v381
    %397 = vmatpush.bf16.msra.mxu0 %v380
    %398 = vmatpush.bf16.msra.mxu0 %v379
    %399 = vmatpush.bf16.msra.mxu0 %v378
    %400 = vmatpush.bf16.msra.mxu0 %v377
    %401 = vmatmul.bf16.gmra.mxu0 %v344
    %v402 = vpop.f32.mrf.mxu0
    %v403 = vadd.f32 0.0, %v402
    %v404 = vpop.f32.mrf.mxu0
    %v405 = vadd.f32 0.0, %v404
    %406 = vdwg.mxu0
    %v407 = vadd.f32 %v342, %v403
    %v408 = vadd.f32 %v343, %v405
    %v409 = vtanh.pop %v407
    %v410 = vtanh.pop %v408
    %v411 = vpack.c.bf16 %v409, %v409
    %v412 = vpack.c.bf16 %v410, %v410
    %413 = vst [vmem:[#allocation14] sm:$0xf] %v411
    %414 = vst [vmem:[#allocation14 + $0x4] sm:$0xf] %v412
    %s415 = scalar_lea.vmem [#allocation2], 16
    %v416 = vld [vmem:[%s415] sm:$0xff]
    %v417 = vld [vmem:[%s415 + $0x8] sm:$0xff]
    %v420 = vunpack.c.l.b16 %v411
    %v421 = vunpack.c.l.b16 %v412
    %v422 = vpack.c.b16 %v421, %v420
    %424 = vmatpush.bf16.msra.mxu0 %v384
    %425 = vmatpush.bf16.msra.mxu0 %v383
    %426 = vmatpush.bf16.msra.mxu0 %v382
    %427 = vmatpush.bf16.msra.mxu0 %v381
    %428 = vmatpush.bf16.msra.mxu0 %v380
    %429 = vmatpush.bf16.msra.mxu0 %v379
    %430 = vmatpush.bf16.msra.mxu0 %v378
    %431 = vmatpush.bf16.msra.mxu0 %v377
    %432 = vmatmul.bf16.gmra.mxu0 %v422
    %v433 = vpop.f32.mrf.mxu0
    %v434 = vadd.f32 0.0, %v433
    %v435 = vpop.f32.mrf.mxu0
    %v436 = vadd.f32 0.0, %v435
    %437 = vdwg.mxu0
    %v438 = vadd.f32 %v416, %v434
    %v439 = vadd.f32 %v417, %v436
    %v440 = vtanh.pop %v438
    %v441 = vtanh.pop %v439
    %v442 = vpack.c.bf16 %v440, %v440
    %v443 = vpack.c.bf16 %v441, %v441
    %s444 = scalar_lea.vmem [#allocation14], 8
    %445 = vst [vmem:[%s444] sm:$0xf] %v442
    %446 = vst [vmem:[%s444 + $0x4] sm:$0xf] %v443
    %s447 = scalar_lea.vmem [#allocation2], 32
    %v448 = vld [vmem:[%s447] sm:$0xff]
    %v449 = vld [vmem:[%s447 + $0x8] sm:$0xff]
    %v452 = vunpack.c.l.b16 %v442
    %v453 = vunpack.c.l.b16 %v443
    %v454 = vpack.c.b16 %v453, %v452
    %456 = vmatpush.bf16.msra.mxu0 %v384
    %457 = vmatpush.bf16.msra.mxu0 %v383
    %458 = vmatpush.bf16.msra.mxu0 %v382
    %459 = vmatpush.bf16.msra.mxu0 %v381
    %460 = vmatpush.bf16.msra.mxu0 %v380
    %461 = vmatpush.bf16.msra.mxu0 %v379
    %462 = vmatpush.bf16.msra.mxu0 %v378
    %463 = vmatpush.bf16.msra.mxu0 %v377
    %464 = vmatmul.bf16.gmra.mxu0 %v454
    %v465 = vpop.f32.mrf.mxu0
    %v466 = vadd.f32 0.0, %v465
    %v467 = vpop.f32.mrf.mxu0
    %v468 = vadd.f32 0.0, %v467
    %469 = vdwg.mxu0
    %v470 = vadd.f32 %v448, %v466
    %v471 = vadd.f32 %v449, %v468
    %v472 = vtanh.pop %v470
    %v473 = vtanh.pop %v471
    %v474 = vpack.c.bf16 %v472, %v472
    %v475 = vpack.c.bf16 %v473, %v473
    %s476 = scalar_lea.vmem [#allocation14], 16
    %477 = vst [vmem:[%s476] sm:$0xf] %v474
    %478 = vst [vmem:[%s476 + $0x4] sm:$0xf] %v475
    %s479 = scalar_lea.vmem [#allocation2], 48
    %v480 = vld [vmem:[%s479] sm:$0xff]
    %v481 = vld [vmem:[%s479 + $0x8] sm:$0xff]
    %v484 = vunpack.c.l.b16 %v474
    %v485 = vunpack.c.l.b16 %v475
    %v486 = vpack.c.b16 %v485, %v484
    %488 = vmatpush.bf16.msra.mxu0 %v384
    %489 = vmatpush.bf16.msra.mxu0 %v383
    %490 = vmatpush.bf16.msra.mxu0 %v382
    %491 = vmatpush.bf16.msra.mxu0 %v381
    %492 = vmatpush.bf16.msra.mxu0 %v380
    %493 = vmatpush.bf16.msra.mxu0 %v379
    %494 = vmatpush.bf16.msra.mxu0 %v378
    %495 = vmatpush.bf16.msra.mxu0 %v377
    %496 = vmatmul.bf16.gmra.mxu0 %v486
    %v497 = vpop.f32.mrf.mxu0
    %v498 = vadd.f32 0.0, %v497
    %v499 = vpop.f32.mrf.mxu0
    %v500 = vadd.f32 0.0, %v499
    %501 = vdwg.mxu0
    %v502 = vadd.f32 %v480, %v498
    %v503 = vadd.f32 %v481, %v500
    %v504 = vtanh.pop %v502
    %v505 = vtanh.pop %v503
    %v506 = vpack.c.bf16 %v504, %v504
    %v507 = vpack.c.bf16 %v505, %v505
    %s508 = scalar_lea.vmem [#allocation14], 24
    %509 = vst [vmem:[%s508] sm:$0xf] %v506
    %510 = vst [vmem:[%s508 + $0x4] sm:$0xf] %v507
    %s511 = scalar_lea.vmem [#allocation2], 64
    %v512 = vld [vmem:[%s511] sm:$0xff]
    %v513 = vld [vmem:[%s511 + $0x8] sm:$0xff]
    %v516 = vunpack.c.l.b16 %v506
    %v517 = vunpack.c.l.b16 %v507
    %v518 = vpack.c.b16 %v517, %v516
    %520 = vmatpush.bf16.msra.mxu0 %v384
    %521 = vmatpush.bf16.msra.mxu0 %v383
    %522 = vmatpush.bf16.msra.mxu0 %v382
    %523 = vmatpush.bf16.msra.mxu0 %v381
    %524 = vmatpush.bf16.msra.mxu0 %v380
    %525 = vmatpush.bf16.msra.mxu0 %v379
    %526 = vmatpush.bf16.msra.mxu0 %v378
    %527 = vmatpush.bf16.msra.mxu0 %v377
    %528 = vmatmul.bf16.gmra.mxu0 %v518
    %v529 = vpop.f32.mrf.mxu0
    %v530 = vadd.f32 0.0, %v529
    %v531 = vpop.f32.mrf.mxu0
    %v532 = vadd.f32 0.0, %v531
    %533 = vdwg.mxu0
    %v534 = vadd.f32 %v512, %v530
    %v535 = vadd.f32 %v513, %v532
    %v536 = vtanh.pop %v534
    %v537 = vtanh.pop %v535
    %v538 = vpack.c.bf16 %v536, %v536
    %v539 = vpack.c.bf16 %v537, %v537
    %s540 = scalar_lea.vmem [#allocation14], 32
    %541 = vst [vmem:[%s540] sm:$0xf] %v538
    %542 = vst [vmem:[%s540 + $0x4] sm:$0xf] %v539
    %s543 = scalar_lea.vmem [#allocation2], 80
    %v544 = vld [vmem:[%s543] sm:$0xff]
    %v545 = vld [vmem:[%s543 + $0x8] sm:$0xff]
    %v548 = vunpack.c.l.b16 %v538
    %v549 = vunpack.c.l.b16 %v539
    %v550 = vpack.c.b16 %v549, %v548
    %552 = vmatpush.bf16.msra.mxu0 %v384
    %553 = vmatpush.bf16.msra.mxu0 %v383
    %554 = vmatpush.bf16.msra.mxu0 %v382
    %555 = vmatpush.bf16.msra.mxu0 %v381
    %556 = vmatpush.bf16.msra.mxu0 %v380
    %557 = vmatpush.bf16.msra.mxu0 %v379
    %558 = vmatpush.bf16.msra.mxu0 %v378
    %559 = vmatpush.bf16.msra.mxu0 %v377
    %560 = vmatmul.bf16.gmra.mxu0 %v550
    %v561 = vpop.f32.mrf.mxu0
    %v562 = vadd.f32 0.0, %v561
    %v563 = vpop.f32.mrf.mxu0
    %v564 = vadd.f32 0.0, %v563
    %565 = vdwg.mxu0
    %v566 = vadd.f32 %v544, %v562
    %v567 = vadd.f32 %v545, %v564
    %v568 = vtanh.pop %v566
    %v569 = vtanh.pop %v567
    %v570 = vpack.c.bf16 %v568, %v568
    %v571 = vpack.c.bf16 %v569, %v569
    %s572 = scalar_lea.vmem [#allocation14], 40
    %573 = vst [vmem:[%s572] sm:$0xf] %v570
    %574 = vst [vmem:[%s572 + $0x4] sm:$0xf] %v571
    %s575 = scalar_lea.vmem [#allocation2], 96
    %v576 = vld [vmem:[%s575] sm:$0xff]
    %v577 = vld [vmem:[%s575 + $0x8] sm:$0xff]
    %v580 = vunpack.c.l.b16 %v570
    %v581 = vunpack.c.l.b16 %v571
    %v582 = vpack.c.b16 %v581, %v580
    %584 = vmatpush.bf16.msra.mxu0 %v384
    %585 = vmatpush.bf16.msra.mxu0 %v383
    %586 = vmatpush.bf16.msra.mxu0 %v382
    %587 = vmatpush.bf16.msra.mxu0 %v381
    %588 = vmatpush.bf16.msra.mxu0 %v380
    %589 = vmatpush.bf16.msra.mxu0 %v379
    %590 = vmatpush.bf16.msra.mxu0 %v378
    %591 = vmatpush.bf16.msra.mxu0 %v377
    %592 = vmatmul.bf16.gmra.mxu0 %v582
    %v593 = vpop.f32.mrf.mxu0
    %v594 = vadd.f32 0.0, %v593
    %v595 = vpop.f32.mrf.mxu0
    %v596 = vadd.f32 0.0, %v595
    %597 = vdwg.mxu0
    %v598 = vadd.f32 %v576, %v594
    %v599 = vadd.f32 %v577, %v596
    %v600 = vtanh.pop %v598
    %v601 = vtanh.pop %v599
    %v602 = vpack.c.bf16 %v600, %v600
    %v603 = vpack.c.bf16 %v601, %v601
    %s604 = scalar_lea.vmem [#allocation14], 48
    %605 = vst [vmem:[%s604] sm:$0xf] %v602
    %606 = vst [vmem:[%s604 + $0x4] sm:$0xf] %v603
    %s607 = scalar_lea.vmem [#allocation2], 112
    %v608 = vld [vmem:[%s607] sm:$0xff]
    %v609 = vld [vmem:[%s607 + $0x8] sm:$0xff]
    %v612 = vunpack.c.l.b16 %v602
    %v613 = vunpack.c.l.b16 %v603
    %v614 = vpack.c.b16 %v613, %v612
    %616 = vmatpush.bf16.msra.mxu0 %v384
    %617 = vmatpush.bf16.msra.mxu0 %v383
    %618 = vmatpush.bf16.msra.mxu0 %v382
    %619 = vmatpush.bf16.msra.mxu0 %v381
    %620 = vmatpush.bf16.msra.mxu0 %v380
    %621 = vmatpush.bf16.msra.mxu0 %v379
    %622 = vmatpush.bf16.msra.mxu0 %v378
    %623 = vmatpush.bf16.msra.mxu0 %v377
    %624 = vmatmul.bf16.gmra.mxu0 %v614
    %v625 = vpop.f32.mrf.mxu0
    %v626 = vadd.f32 0.0, %v625
    %v627 = vpop.f32.mrf.mxu0
    %v628 = vadd.f32 0.0, %v627
    %629 = vdwg.mxu0
    %v630 = vadd.f32 %v608, %v626
    %v631 = vadd.f32 %v609, %v628
    %v632 = vtanh.pop %v630
    %v633 = vtanh.pop %v631
    %v634 = vpack.c.bf16 %v632, %v632
    %v635 = vpack.c.bf16 %v633, %v633
    %s636 = scalar_lea.vmem [#allocation14], 56
    %637 = vst [vmem:[%s636] sm:$0xf] %v634
    %638 = vst [vmem:[%s636 + $0x4] sm:$0xf] %v635
    %639 = vst [vmem:[#allocation15] sm:$0xff] %v632
    %640 = vst [vmem:[#allocation15 + $0x8] sm:$0xff] %v633
    %v641 = vld [vmem:[#allocation9] sm:$0xf]
    %v642 = vld [vmem:[#allocation9 + $0x4] sm:$0xf]
    %v643 = vld [vmem:[#allocation9 + $0x8] sm:$0xf]
    %v644 = vld [vmem:[#allocation9 + $0xc] sm:$0xf]
    %v645 = vld [vmem:[#allocation9 + $0x10] sm:$0xf]
    %v646 = vld [vmem:[#allocation9 + $0x14] sm:$0xf]
    %v647 = vld [vmem:[#allocation9 + $0x18] sm:$0xf]
    %v648 = vld [vmem:[#allocation9 + $0x1c] sm:$0xf]
    %v649 = vld [vmem:[#allocation9 + $0x20] sm:$0xf]
    %v650 = vld [vmem:[#allocation9 + $0x24] sm:$0xf]
    %v651 = vld [vmem:[#allocation9 + $0x28] sm:$0xf]
    %v652 = vld [vmem:[#allocation9 + $0x2c] sm:$0xf]
    %v653 = vld [vmem:[#allocation9 + $0x30] sm:$0xf]
    %v654 = vld [vmem:[#allocation9 + $0x34] sm:$0xf]
    %v655 = vld [vmem:[#allocation9 + $0x38] sm:$0xf]
    %v656 = vld [vmem:[#allocation9 + $0x3c] sm:$0xf]
    %v657 = vld [vmem:[#allocation12] sm:$0xf]
    %v658 = vld [vmem:[#allocation12 + $0x4] sm:$0xf]
    %v659 = vld [vmem:[#allocation12 + $0x8] sm:$0xf]
    %v660 = vld [vmem:[#allocation12 + $0xc] sm:$0xf]
    %v661 = vld [vmem:[#allocation12 + $0x10] sm:$0xf]
    %v662 = vld [vmem:[#allocation12 + $0x14] sm:$0xf]
    %v663 = vld [vmem:[#allocation12 + $0x18] sm:$0xf]
    %v664 = vld [vmem:[#allocation12 + $0x1c] sm:$0xf]
    %v665 = vld [vmem:[#allocation12 + $0x20] sm:$0xf]
    %v666 = vld [vmem:[#allocation12 + $0x24] sm:$0xf]
    %v667 = vld [vmem:[#allocation12 + $0x28] sm:$0xf]
    %v668 = vld [vmem:[#allocation12 + $0x2c] sm:$0xf]
    %v669 = vld [vmem:[#allocation12 + $0x30] sm:$0xf]
    %v670 = vld [vmem:[#allocation12 + $0x34] sm:$0xf]
    %v671 = vld [vmem:[#allocation12 + $0x38] sm:$0xf]
    %v672 = vld [vmem:[#allocation12 + $0x3c] sm:$0xf]
    %v673 = vld [vmem:[%s7] sm:$0x1]
    %v674 = vld [vmem:[#allocation14] sm:$0xf]
    %v675 = vld [vmem:[#allocation14 + $0x4] sm:$0xf]
    %v676 = vld [vmem:[#allocation14 + $0x8] sm:$0xf]
    %v677 = vld [vmem:[#allocation14 + $0xc] sm:$0xf]
    %v678 = vld [vmem:[#allocation14 + $0x10] sm:$0xf]
    %v679 = vld [vmem:[#allocation14 + $0x14] sm:$0xf]
    %v680 = vld [vmem:[#allocation14 + $0x18] sm:$0xf]
    %v681 = vld [vmem:[#allocation14 + $0x1c] sm:$0xf]
    %v682 = vld [vmem:[#allocation14 + $0x20] sm:$0xf]
    %v683 = vld [vmem:[#allocation14 + $0x24] sm:$0xf]
    %v684 = vld [vmem:[#allocation14 + $0x28] sm:$0xf]
    %v685 = vld [vmem:[#allocation14 + $0x2c] sm:$0xf]
    %v686 = vld [vmem:[#allocation14 + $0x30] sm:$0xf]
    %v687 = vld [vmem:[#allocation14 + $0x34] sm:$0xf]
    %v688 = vld [vmem:[#allocation14 + $0x38] sm:$0xf]
    %v689 = vld [vmem:[#allocation14 + $0x3c] sm:$0xf]
    %v691 = vperm.slane %v673, 0
    %v709 = vunpack.c.l.b16 %v674
    %v710 = vunpack.c.l.b16 %v675
    %v711 = vunpack.c.l.b16 %v676
    %v712 = vunpack.c.l.b16 %v677
    %v713 = vunpack.c.l.b16 %v678
    %v714 = vunpack.c.l.b16 %v679
    %v715 = vunpack.c.l.b16 %v680
    %v716 = vunpack.c.l.b16 %v681
    %v717 = vunpack.c.l.b16 %v682
    %v718 = vunpack.c.l.b16 %v683
    %v719 = vunpack.c.l.b16 %v684
    %v720 = vunpack.c.l.b16 %v685
    %v721 = vunpack.c.l.b16 %v686
    %v722 = vunpack.c.l.b16 %v687
    %v723 = vunpack.c.l.b16 %v688
    %v724 = vunpack.c.l.b16 %v689
    %v725 = vpack.c.b16 %v710, %v709
    %v726 = vpack.c.b16 %v712, %v711
    %v727 = vpack.c.b16 %v714, %v713
    %v728 = vpack.c.b16 %v716, %v715
    %v729 = vpack.c.b16 %v718, %v717
    %v730 = vpack.c.b16 %v720, %v719
    %v731 = vpack.c.b16 %v722, %v721
    %v732 = vpack.c.b16 %v724, %v723
    %v757 = vunpack.c.l.b16 %v641
    %v758 = vunpack.c.l.b16 %v642
    %v759 = vunpack.c.l.b16 %v643
    %v760 = vunpack.c.l.b16 %v644
    %v761 = vunpack.c.l.b16 %v645
    %v762 = vunpack.c.l.b16 %v646
    %v763 = vunpack.c.l.b16 %v647
    %v764 = vunpack.c.l.b16 %v648
    %v765 = vunpack.c.l.b16 %v649
    %v766 = vunpack.c.l.b16 %v650
    %v767 = vunpack.c.l.b16 %v651
    %v768 = vunpack.c.l.b16 %v652
    %v769 = vunpack.c.l.b16 %v653
    %v770 = vunpack.c.l.b16 %v654
    %v771 = vunpack.c.l.b16 %v655
    %v772 = vunpack.c.l.b16 %v656
    %v773 = vpack.c.b16 %v758, %v757
    %v774 = vpack.c.b16 %v760, %v759
    %v775 = vpack.c.b16 %v762, %v761
    %v776 = vpack.c.b16 %v764, %v763
    %v777 = vpack.c.b16 %v766, %v765
    %v778 = vpack.c.b16 %v768, %v767
    %v779 = vpack.c.b16 %v770, %v769
    %v780 = vpack.c.b16 %v772, %v771
    %789 = vmatpush.bf16.msra.mxu0 %v780
    %790 = vmatpush.bf16.msra.mxu0 %v779
    %791 = vmatpush.bf16.msra.mxu0 %v778
    %792 = vmatpush.bf16.msra.mxu0 %v777
    %793 = vmatpush.bf16.msra.mxu0 %v776
    %794 = vmatpush.bf16.msra.mxu0 %v775
    %795 = vmatpush.bf16.msra.mxu0 %v774
    %796 = vmatpush.bf16.msra.mxu0 %v773
    %797 = vmatmul.bf16.gmra.mxu0 %v725
    %v798 = vpop.f32.mrf.mxu0
    %v799 = vadd.f32 %v691, %v798
    %v800 = vpop.f32.mrf.mxu0
    %v801 = vadd.f32 %v691, %v800
    %802 = vmatmul.bf16.gmra.mxu0 %v726
    %v803 = vpop.f32.mrf.mxu0
    %v804 = vadd.f32 %v691, %v803
    %v805 = vpop.f32.mrf.mxu0
    %v806 = vadd.f32 %v691, %v805
    %807 = vmatmul.bf16.gmra.mxu0 %v727
    %v808 = vpop.f32.mrf.mxu0
    %v809 = vadd.f32 %v691, %v808
    %v810 = vpop.f32.mrf.mxu0
    %v811 = vadd.f32 %v691, %v810
    %812 = vmatmul.bf16.gmra.mxu0 %v728
    %v813 = vpop.f32.mrf.mxu0
    %v814 = vadd.f32 %v691, %v813
    %v815 = vpop.f32.mrf.mxu0
    %v816 = vadd.f32 %v691, %v815
    %817 = vmatmul.bf16.gmra.mxu0 %v729
    %v818 = vpop.f32.mrf.mxu0
    %v819 = vadd.f32 %v691, %v818
    %v820 = vpop.f32.mrf.mxu0
    %v821 = vadd.f32 %v691, %v820
    %822 = vmatmul.bf16.gmra.mxu0 %v730
    %v823 = vpop.f32.mrf.mxu0
    %v824 = vadd.f32 %v691, %v823
    %v825 = vpop.f32.mrf.mxu0
    %v826 = vadd.f32 %v691, %v825
    %827 = vmatmul.bf16.gmra.mxu0 %v731
    %v828 = vpop.f32.mrf.mxu0
    %v829 = vadd.f32 %v691, %v828
    %v830 = vpop.f32.mrf.mxu0
    %v831 = vadd.f32 %v691, %v830
    %832 = vmatmul.bf16.gmra.mxu0 %v732
    %v833 = vpop.f32.mrf.mxu0
    %v834 = vadd.f32 %v691, %v833
    %v835 = vpop.f32.mrf.mxu0
    %v836 = vadd.f32 %v691, %v835
    %837 = vdwg.mxu0
    %838 = vst [vmem:[#allocation2] sm:$0xff] %v799
    %839 = vst [vmem:[#allocation2 + $0x8] sm:$0xff] %v801
    %840 = vst [vmem:[#allocation2 + $0x10] sm:$0xff] %v804
    %841 = vst [vmem:[#allocation2 + $0x18] sm:$0xff] %v806
    %842 = vst [vmem:[#allocation2 + $0x20] sm:$0xff] %v809
    %843 = vst [vmem:[#allocation2 + $0x28] sm:$0xff] %v811
    %844 = vst [vmem:[#allocation2 + $0x30] sm:$0xff] %v814
    %845 = vst [vmem:[#allocation2 + $0x38] sm:$0xff] %v816
    %846 = vst [vmem:[#allocation2 + $0x40] sm:$0xff] %v819
    %847 = vst [vmem:[#allocation2 + $0x48] sm:$0xff] %v821
    %848 = vst [vmem:[#allocation2 + $0x50] sm:$0xff] %v824
    %849 = vst [vmem:[#allocation2 + $0x58] sm:$0xff] %v826
    %850 = vst [vmem:[#allocation2 + $0x60] sm:$0xff] %v829
    %851 = vst [vmem:[#allocation2 + $0x68] sm:$0xff] %v831
    %852 = vst [vmem:[#allocation2 + $0x70] sm:$0xff] %v834
    %853 = vst [vmem:[#allocation2 + $0x78] sm:$0xff] %v836
    %s854 = scalar_lea.vmem [#allocation6], 16
    %v855 = vld [vmem:[%s854] sm:$0xff]
    %v856 = vld [vmem:[%s854 + $0x8] sm:$0xff]
    %v857 = vld [vmem:[#allocation2] sm:$0xff]
    %v858 = vld [vmem:[#allocation2 + $0x8] sm:$0xff]
    %v859 = vpack.c.bf16 %v856, %v855
    %v876 = vunpack.c.l.b16 %v657
    %v877 = vunpack.c.l.b16 %v658
    %v878 = vunpack.c.l.b16 %v659
    %v879 = vunpack.c.l.b16 %v660
    %v880 = vunpack.c.l.b16 %v661
    %v881 = vunpack.c.l.b16 %v662
    %v882 = vunpack.c.l.b16 %v663
    %v883 = vunpack.c.l.b16 %v664
    %v884 = vunpack.c.l.b16 %v665
    %v885 = vunpack.c.l.b16 %v666
    %v886 = vunpack.c.l.b16 %v667
    %v887 = vunpack.c.l.b16 %v668
    %v888 = vunpack.c.l.b16 %v669
    %v889 = vunpack.c.l.b16 %v670
    %v890 = vunpack.c.l.b16 %v671
    %v891 = vunpack.c.l.b16 %v672
    %v892 = vpack.c.b16 %v877, %v876
    %v893 = vpack.c.b16 %v879, %v878
    %v894 = vpack.c.b16 %v881, %v880
    %v895 = vpack.c.b16 %v883, %v882
    %v896 = vpack.c.b16 %v885, %v884
    %v897 = vpack.c.b16 %v887, %v886
    %v898 = vpack.c.b16 %v889, %v888
    %v899 = vpack.c.b16 %v891, %v890
    %908 = vmatpush.bf16.msra.mxu0 %v899
    %909 = vmatpush.bf16.msra.mxu0 %v898
    %910 = vmatpush.bf16.msra.mxu0 %v897
    %911 = vmatpush.bf16.msra.mxu0 %v896
    %912 = vmatpush.bf16.msra.mxu0 %v895
    %913 = vmatpush.bf16.msra.mxu0 %v894
    %914 = vmatpush.bf16.msra.mxu0 %v893
    %915 = vmatpush.bf16.msra.mxu0 %v892
    %916 = vmatmul.bf16.gmra.mxu0 %v859
    %v917 = vpop.f32.mrf.mxu0
    %v918 = vadd.f32 0.0, %v917
    %v919 = vpop.f32.mrf.mxu0
    %v920 = vadd.f32 0.0, %v919
    %921 = vdwg.mxu0
    %v922 = vadd.f32 %v857, %v918
    %v923 = vadd.f32 %v858, %v920
    %v924 = vtanh.pop %v922
    %v925 = vtanh.pop %v923
    %v926 = vpack.c.bf16 %v924, %v924
    %v927 = vpack.c.bf16 %v925, %v925
    %928 = vst [vmem:[#allocation14] sm:$0xf] %v926
    %929 = vst [vmem:[#allocation14 + $0x4] sm:$0xf] %v927
    %v930 = vld [vmem:[%s415] sm:$0xff]
    %v931 = vld [vmem:[%s415 + $0x8] sm:$0xff]
    %v934 = vunpack.c.l.b16 %v926
    %v935 = vunpack.c.l.b16 %v927
    %v936 = vpack.c.b16 %v935, %v934
    %938 = vmatpush.bf16.msra.mxu0 %v899
    %939 = vmatpush.bf16.msra.mxu0 %v898
    %940 = vmatpush.bf16.msra.mxu0 %v897
    %941 = vmatpush.bf16.msra.mxu0 %v896
    %942 = vmatpush.bf16.msra.mxu0 %v895
    %943 = vmatpush.bf16.msra.mxu0 %v894
    %944 = vmatpush.bf16.msra.mxu0 %v893
    %945 = vmatpush.bf16.msra.mxu0 %v892
    %946 = vmatmul.bf16.gmra.mxu0 %v936
    %v947 = vpop.f32.mrf.mxu0
    %v948 = vadd.f32 0.0, %v947
    %v949 = vpop.f32.mrf.mxu0
    %v950 = vadd.f32 0.0, %v949
    %951 = vdwg.mxu0
    %v952 = vadd.f32 %v930, %v948
    %v953 = vadd.f32 %v931, %v950
    %v954 = vtanh.pop %v952
    %v955 = vtanh.pop %v953
    %v956 = vpack.c.bf16 %v954, %v954
    %v957 = vpack.c.bf16 %v955, %v955
    %958 = vst [vmem:[%s444] sm:$0xf] %v956
    %959 = vst [vmem:[%s444 + $0x4] sm:$0xf] %v957
    %v960 = vld [vmem:[%s447] sm:$0xff]
    %v961 = vld [vmem:[%s447 + $0x8] sm:$0xff]
    %v964 = vunpack.c.l.b16 %v956
    %v965 = vunpack.c.l.b16 %v957
    %v966 = vpack.c.b16 %v965, %v964
    %968 = vmatpush.bf16.msra.mxu0 %v899
    %969 = vmatpush.bf16.msra.mxu0 %v898
    %970 = vmatpush.bf16.msra.mxu0 %v897
    %971 = vmatpush.bf16.msra.mxu0 %v896
    %972 = vmatpush.bf16.msra.mxu0 %v895
    %973 = vmatpush.bf16.msra.mxu0 %v894
    %974 = vmatpush.bf16.msra.mxu0 %v893
    %975 = vmatpush.bf16.msra.mxu0 %v892
    %976 = vmatmul.bf16.gmra.mxu0 %v966
    %v977 = vpop.f32.mrf.mxu0
    %v978 = vadd.f32 0.0, %v977
    %v979 = vpop.f32.mrf.mxu0
    %v980 = vadd.f32 0.0, %v979
    %981 = vdwg.mxu0
    %v982 = vadd.f32 %v960, %v978
    %v983 = vadd.f32 %v961, %v980
    %v984 = vtanh.pop %v982
    %v985 = vtanh.pop %v983
    %v986 = vpack.c.bf16 %v984, %v984
    %v987 = vpack.c.bf16 %v985, %v985
    %988 = vst [vmem:[%s476] sm:$0xf] %v986
    %989 = vst [vmem:[%s476 + $0x4] sm:$0xf] %v987
    %v990 = vld [vmem:[%s479] sm:$0xff]
    %v991 = vld [vmem:[%s479 + $0x8] sm:$0xff]
    %v994 = vunpack.c.l.b16 %v986
    %v995 = vunpack.c.l.b16 %v987
    %v996 = vpack.c.b16 %v995, %v994
    %998 = vmatpush.bf16.msra.mxu0 %v899
    %999 = vmatpush.bf16.msra.mxu0 %v898
    %1000 = vmatpush.bf16.msra.mxu0 %v897
    %1001 = vmatpush.bf16.msra.mxu0 %v896
    %1002 = vmatpush.bf16.msra.mxu0 %v895
    %1003 = vmatpush.bf16.msra.mxu0 %v894
    %1004 = vmatpush.bf16.msra.mxu0 %v893
    %1005 = vmatpush.bf16.msra.mxu0 %v892
    %1006 = vmatmul.bf16.gmra.mxu0 %v996
    %v1007 = vpop.f32.mrf.mxu0
    %v1008 = vadd.f32 0.0, %v1007
    %v1009 = vpop.f32.mrf.mxu0
    %v1010 = vadd.f32 0.0, %v1009
    %1011 = vdwg.mxu0
    %v1012 = vadd.f32 %v990, %v1008
    %v1013 = vadd.f32 %v991, %v1010
    %v1014 = vtanh.pop %v1012
    %v1015 = vtanh.pop %v1013
    %v1016 = vpack.c.bf16 %v1014, %v1014
    %v1017 = vpack.c.bf16 %v1015, %v1015
    %1018 = vst [vmem:[%s508] sm:$0xf] %v1016
    %1019 = vst [vmem:[%s508 + $0x4] sm:$0xf] %v1017
    %v1020 = vld [vmem:[%s511] sm:$0xff]
    %v1021 = vld [vmem:[%s511 + $0x8] sm:$0xff]
    %v1024 = vunpack.c.l.b16 %v1016
    %v1025 = vunpack.c.l.b16 %v1017
    %v1026 = vpack.c.b16 %v1025, %v1024
    %1028 = vmatpush.bf16.msra.mxu0 %v899
    %1029 = vmatpush.bf16.msra.mxu0 %v898
    %1030 = vmatpush.bf16.msra.mxu0 %v897
    %1031 = vmatpush.bf16.msra.mxu0 %v896
    %1032 = vmatpush.bf16.msra.mxu0 %v895
    %1033 = vmatpush.bf16.msra.mxu0 %v894
    %1034 = vmatpush.bf16.msra.mxu0 %v893
    %1035 = vmatpush.bf16.msra.mxu0 %v892
    %1036 = vmatmul.bf16.gmra.mxu0 %v1026
    %v1037 = vpop.f32.mrf.mxu0
    %v1038 = vadd.f32 0.0, %v1037
    %v1039 = vpop.f32.mrf.mxu0
    %v1040 = vadd.f32 0.0, %v1039
    %1041 = vdwg.mxu0
    %v1042 = vadd.f32 %v1020, %v1038
    %v1043 = vadd.f32 %v1021, %v1040
    %v1044 = vtanh.pop %v1042
    %v1045 = vtanh.pop %v1043
    %v1046 = vpack.c.bf16 %v1044, %v1044
    %v1047 = vpack.c.bf16 %v1045, %v1045
    %1048 = vst [vmem:[%s540] sm:$0xf] %v1046
    %1049 = vst [vmem:[%s540 + $0x4] sm:$0xf] %v1047
    %v1050 = vld [vmem:[%s543] sm:$0xff]
    %v1051 = vld [vmem:[%s543 + $0x8] sm:$0xff]
    %v1054 = vunpack.c.l.b16 %v1046
    %v1055 = vunpack.c.l.b16 %v1047
    %v1056 = vpack.c.b16 %v1055, %v1054
    %1058 = vmatpush.bf16.msra.mxu0 %v899
    %1059 = vmatpush.bf16.msra.mxu0 %v898
    %1060 = vmatpush.bf16.msra.mxu0 %v897
    %1061 = vmatpush.bf16.msra.mxu0 %v896
    %1062 = vmatpush.bf16.msra.mxu0 %v895
    %1063 = vmatpush.bf16.msra.mxu0 %v894
    %1064 = vmatpush.bf16.msra.mxu0 %v893
    %1065 = vmatpush.bf16.msra.mxu0 %v892
    %1066 = vmatmul.bf16.gmra.mxu0 %v1056
    %v1067 = vpop.f32.mrf.mxu0
    %v1068 = vadd.f32 0.0, %v1067
    %v1069 = vpop.f32.mrf.mxu0
    %v1070 = vadd.f32 0.0, %v1069
    %1071 = vdwg.mxu0
    %v1072 = vadd.f32 %v1050, %v1068
    %v1073 = vadd.f32 %v1051, %v1070
    %v1074 = vtanh.pop %v1072
    %v1075 = vtanh.pop %v1073
    %v1076 = vpack.c.bf16 %v1074, %v1074
    %v1077 = vpack.c.bf16 %v1075, %v1075
    %1078 = vst [vmem:[%s572] sm:$0xf] %v1076
    %1079 = vst [vmem:[%s572 + $0x4] sm:$0xf] %v1077
    %v1080 = vld [vmem:[%s575] sm:$0xff]
    %v1081 = vld [vmem:[%s575 + $0x8] sm:$0xff]
    %v1084 = vunpack.c.l.b16 %v1076
    %v1085 = vunpack.c.l.b16 %v1077
    %v1086 = vpack.c.b16 %v1085, %v1084
    %1088 = vmatpush.bf16.msra.mxu0 %v899
    %1089 = vmatpush.bf16.msra.mxu0 %v898
    %1090 = vmatpush.bf16.msra.mxu0 %v897
    %1091 = vmatpush.bf16.msra.mxu0 %v896
    %1092 = vmatpush.bf16.msra.mxu0 %v895
    %1093 = vmatpush.bf16.msra.mxu0 %v894
    %1094 = vmatpush.bf16.msra.mxu0 %v893
    %1095 = vmatpush.bf16.msra.mxu0 %v892
    %1096 = vmatmul.bf16.gmra.mxu0 %v1086
    %v1097 = vpop.f32.mrf.mxu0
    %v1098 = vadd.f32 0.0, %v1097
    %v1099 = vpop.f32.mrf.mxu0
    %v1100 = vadd.f32 0.0, %v1099
    %1101 = vdwg.mxu0
    %v1102 = vadd.f32 %v1080, %v1098
    %v1103 = vadd.f32 %v1081, %v1100
    %v1104 = vtanh.pop %v1102
    %v1105 = vtanh.pop %v1103
    %v1106 = vpack.c.bf16 %v1104, %v1104
    %v1107 = vpack.c.bf16 %v1105, %v1105
    %1108 = vst [vmem:[%s604] sm:$0xf] %v1106
    %1109 = vst [vmem:[%s604 + $0x4] sm:$0xf] %v1107
    %v1110 = vld [vmem:[%s607] sm:$0xff]
    %v1111 = vld [vmem:[%s607 + $0x8] sm:$0xff]
    %v1114 = vunpack.c.l.b16 %v1106
    %v1115 = vunpack.c.l.b16 %v1107
    %v1116 = vpack.c.b16 %v1115, %v1114
    %1118 = vmatpush.bf16.msra.mxu0 %v899
    %1119 = vmatpush.bf16.msra.mxu0 %v898
    %1120 = vmatpush.bf16.msra.mxu0 %v897
    %1121 = vmatpush.bf16.msra.mxu0 %v896
    %1122 = vmatpush.bf16.msra.mxu0 %v895
    %1123 = vmatpush.bf16.msra.mxu0 %v894
    %1124 = vmatpush.bf16.msra.mxu0 %v893
    %1125 = vmatpush.bf16.msra.mxu0 %v892
    %1126 = vmatmul.bf16.gmra.mxu0 %v1116
    %v1127 = vpop.f32.mrf.mxu0
    %v1128 = vadd.f32 0.0, %v1127
    %v1129 = vpop.f32.mrf.mxu0
    %v1130 = vadd.f32 0.0, %v1129
    %1131 = vdwg.mxu0
    %v1132 = vadd.f32 %v1110, %v1128
    %v1133 = vadd.f32 %v1111, %v1130
    %v1134 = vtanh.pop %v1132
    %v1135 = vtanh.pop %v1133
    %v1136 = vpack.c.bf16 %v1134, %v1134
    %v1137 = vpack.c.bf16 %v1135, %v1135
    %1138 = vst [vmem:[%s636] sm:$0xf] %v1136
    %1139 = vst [vmem:[%s636 + $0x4] sm:$0xf] %v1137
    %s1140 = scalar_lea.vmem [#allocation15], 16
    %1141 = vst [vmem:[%s1140] sm:$0xff] %v1134
    %1142 = vst [vmem:[%s1140 + $0x8] sm:$0xff] %v1135
    // Predicated region
    $region58: #{tpu_custom_call.1} parent=1 // pred_check
      _
    $region59: #{tpu_custom_call.1} parent=1 // pred_check_branch
      %1144 = sbr.rel (0) target = $region61
    $region60: #{tpu_custom_call.1} parent=1 // pred_region
      %1146 = vsyncadd [#allocation5], 0
      %s1147 = sshll.u32 [#allocation14], 4
      %s1148 = int_to_ptr.vmem [resolvable:$true] %s1147
      %s1149 = sshll.u32 %s8, 4
      %s1150 = int_to_ptr.hbm [resolvable:$true] %s1149
      %1155 = dma.vmem_to_hbm [thread:$0]  %s1148, 1024, %s1150, [#allocation5], 64, 64, 4
    $region61: #{tpu_custom_call.1} parent=1 // pred_fallthru
      _
    // Predicated region
    $region62: #{tpu_custom_call.1} parent=1 // pred_check
      _
    $region63: #{tpu_custom_call.1} parent=1 // pred_check_branch
      %1157 = sbr.rel (0) target = $region65
    $region64: #{tpu_custom_call.1} parent=1 // pred_region
      %1159 = vsyncadd [#allocation16], 0
      %s1160 = sshll.u32 [#allocation15], 4
      %s1161 = int_to_ptr.vmem [resolvable:$true] %s1160
      %s1162 = sshll.u32 %s9, 4
      %s1163 = int_to_ptr.hbm [resolvable:$true] %s1162
      %1168 = dma.vmem_to_hbm [thread:$0]  %s1161, 512, %s1163, [#allocation16], 128, 128, 8
    $region65: #{tpu_custom_call.1} parent=1 // pred_fallthru
      _
    // Predicated region
    $region66: #{tpu_custom_call.1} parent=1 // pred_check
      _
    $region67: #{tpu_custom_call.1} parent=1 // pred_check_branch
      %1170 = sbr.rel (0) target = $region69
    $region68: #{tpu_custom_call.1} parent=1 // pred_region
      %1172 = dma.done [#allocation5], 1024
    $region69: #{tpu_custom_call.1} parent=1 // pred_fallthru
      _
    // Predicated region
    $region70: #{tpu_custom_call.1} parent=1 // pred_check
      _
    $region71: #{tpu_custom_call.1} parent=1 // pred_check_branch
      %1174 = sbr.rel (0) target = $region73
    $region72: #{tpu_custom_call.1} parent=1 // pred_region
      %1176 = dma.done [#allocation16], 512
    $region73: #{tpu_custom_call.1} parent=1 // pred_fallthru
      _
    %1177 = vsyncpa [#allocation4], 1
    %1178 = vsyncpa [#allocation7], 1
    %1179 = vsyncpa [#allocation10], 1
    %1180 = vsyncpa [#allocation13], 1
    %1181 = vsyncpa [#allocation5], 1
    %1182 = vsyncpa [#allocation16], 1

</llo_original>
